<compile_context>
chip_gen: v6e
topology: v6e:2x2x1
jax: 0.10.0
libtpu: 0.0.40
codegen_flags: <defaults>
</compile_context>

<pallas_src>
import math

import jax
import jax.numpy as jnp
from jax.experimental import pallas as pl
from jax.experimental.pallas import tpu as pltpu

# ----------------------------- "cfg" constants ------------------------------
NUM_CLASSES   = 8          # cfg.MODEL.ROI_HEADS.NUM_CLASSES
POOLER_RES    = 4          # cfg.MODEL.ROI_BOX_HEAD.POOLER_RESOLUTION
FEAT_STRIDE   = 4          # input_shape["p3"].stride
FEAT_CHANNELS = 8          # input_shape["p3"].channels
FC_DIM        = 128        # box head FC width (== C*P*P here)
SCORE_THRESH  = 0.05       # cfg.MODEL.ROI_HEADS.SCORE_THRESH_TEST
BBOX_REG_W    = (10.0, 10.0, 5.0, 5.0)          # Box2BoxTransform weights
SCALE_CLAMP   = math.log(1000.0 / 16.0)         # detectron2 scale_clamp
CLS_AGNOSTIC  = False

IMG_H, IMG_W = 64, 64
N_IMAGES     = 2
R_PER_IMAGE  = 8

NC1       = NUM_CLASSES + 1                     # classes + background
K_REG     = 1 if CLS_AGNOSTIC else NUM_CLASSES  # bbox-regression classes
DELTA_OFF = 16                                  # lane offset of deltas in fused out
OUT_PAD   = 128                                 # lane-dense fused output width
TILE_R    = 128                                 # MXU-filling row tile


# ------------------------------ Pallas kernel -------------------------------
def _fused_head_kernel(x_ref, boxes_ref, w1_ref, b1_ref, w2_ref, b2_ref,
                       wf_ref, bf_ref, raw_ref, post_ref):
    """FastRCNNConvFCHead (2 FC+ReLU) + fused cls/bbox predictor + softmax +
    Box2BoxTransform.apply_deltas + image clipping, on one [TILE_R, 128] tile.

    raw_ref  : [TILE_R, 128] fused predictor output
               (logits in [0, NC1), planar deltas in [DELTA_OFF, DELTA_OFF+4K))
    post_ref : [TILE_R, 128] probs in [0, NC1),
               decoded planar boxes (x1|y1|x2|y2, K each) in [DELTA_OFF, +4K)
    """
    x = x_ref[...]                                               # bf16 [R, D]
    h = jnp.dot(x, w1_ref[...], preferred_element_type=jnp.float32) + b1_ref[...]
    h = jnp.maximum(h, 0.0)                                      # fc1 + relu (f32)
    h = jnp.dot(h.astype(jnp.bfloat16), w2_ref[...],
                preferred_element_type=jnp.float32) + b2_ref[...]
    h = jnp.maximum(h, 0.0)                                      # fc2 + relu (f32)

    # single lane-dense 128-wide matmul for both cls scores and bbox deltas
    raw = jnp.dot(h.astype(jnp.bfloat16), wf_ref[...],
                  preferred_element_type=jnp.float32) + bf_ref[...]
    raw_ref[...] = raw                                           # unmasked store

    # softmax over class logits (columns [0, NC1))
    logits = raw[:, :NC1]
    m = jnp.max(logits, axis=-1, keepdims=True)
    e = jnp.exp(logits - m)
    probs = e * pl.reciprocal(jnp.sum(e, axis=-1, keepdims=True), approx=True)

    # Box2BoxTransform.apply_deltas on planar (dx|dy|dw|dh, K each) layout
    b = boxes_ref[...]                                           # [R, 4] f32
    widths  = b[:, 2:3] - b[:, 0:1]
    heights = b[:, 3:4] - b[:, 1:2]
    ctr_x   = b[:, 0:1] + 0.5 * widths
    ctr_y   = b[:, 1:2] + 0.5 * heights

    o = DELTA_OFF
    dx = raw[:, o            : o + 1 * K_REG] / BBOX_REG_W[0]
    dy = raw[:, o + 1 * K_REG: o + 2 * K_REG] / BBOX_REG_W[1]
    dw = raw[:, o + 2 * K_REG: o + 3 * K_REG] / BBOX_REG_W[2]
    dh = raw[:, o + 3 * K_REG: o + 4 * K_REG] / BBOX_REG_W[3]
    dw = jnp.minimum(dw, SCALE_CLAMP)
    dh = jnp.minimum(dh, SCALE_CLAMP)

    pcx = dx * widths + ctr_x
    pcy = dy * heights + ctr_y
    pw  = jnp.exp(dw) * widths
    ph  = jnp.exp(dh) * heights

    x1p = jnp.clip(pcx - 0.5 * pw, 0.0, float(IMG_W))
    y1p = jnp.clip(pcy - 0.5 * ph, 0.0, float(IMG_H))
    x2p = jnp.clip(pcx + 0.5 * pw, 0.0, float(IMG_W))
    y2p = jnp.clip(pcy + 0.5 * ph, 0.0, float(IMG_H))

    rows = x.shape[0]
    zeros_mid  = jnp.zeros((rows, DELTA_OFF - NC1), jnp.float32)
    zeros_tail = jnp.zeros((rows, OUT_PAD - DELTA_OFF - 4 * K_REG), jnp.float32)
    post_ref[...] = jnp.concatenate(
        [probs, zeros_mid, x1p, y1p, x2p, y2p, zeros_tail], axis=-1)


def box_head_predict_decode(pooled, boxes_flat, params):
    """pooled: [R, D] f32; boxes_flat: [R, 4] f32 -> (logits, probs, pred_boxes)."""
    R, D = pooled.shape
    R_pad = pl.cdiv(R, TILE_R) * TILE_R
    pad_r = R_pad - R

    x_pad = jnp.pad(pooled, ((0, pad_r), (0, 0))).astype(jnp.bfloat16)
    b_pad = jnp.pad(boxes_flat, ((0, pad_r), (0, 0))).astype(jnp.float32)

    # Fuse cls + bbox weights into one [FC_DIM, 128] matrix; permute bbox
    # columns to planar (dx|dy|dw|dh, K each) so the kernel slices contiguously.
    K4 = 4 * K_REG
    perm = jnp.concatenate([jnp.arange(K_REG) * 4 + j for j in range(4)])
    wb_p = params["wb"][:, perm]
    bb_p = params["bb"][:, perm]
    wf = jnp.zeros((FC_DIM, OUT_PAD), jnp.float32)
    wf = wf.at[:, :NC1].set(params["wc"]).at[:, DELTA_OFF:DELTA_OFF + K4].set(wb_p)
    bf = jnp.zeros((1, OUT_PAD), jnp.float32)
    bf = bf.at[:, :NC1].set(params["bc"]).at[:, DELTA_OFF:DELTA_OFF + K4].set(bb_p)

    w1 = params["w1"].astype(jnp.bfloat16)
    w2 = params["w2"].astype(jnp.bfloat16)
    wf = wf.astype(jnp.bfloat16)
    b1 = params["b1"].astype(jnp.float32)
    b2 = params["b2"].astype(jnp.float32)

    grid = (R_pad // TILE_R,)
    row = lambda shape: pl.BlockSpec(shape, lambda i: (i, 0))   # per-row-tile
    res = lambda shape: pl.BlockSpec(shape, lambda i: (0, 0))   # resident weights

    flops = 2 * R_pad * FC_DIM * (D + FC_DIM + OUT_PAD)
    trans = R_pad * (NC1 + 2 * K_REG + 1)
    bytes_acc = (x_pad.size * 2 + b_pad.size * 4
                 + (w1.size + w2.size + wf.size) * 2
                 + (b1.size + b2.size + bf.size) * 4
                 + 2 * R_pad * OUT_PAD * 4)

    raw, post = pl.pallas_call(
        _fused_head_kernel,
        grid=grid,
        in_specs=[row((TILE_R, D)), row((TILE_R, 4)),
                  res((D, FC_DIM)), res((1, FC_DIM)),
                  res((FC_DIM, FC_DIM)), res((1, FC_DIM)),
                  res((FC_DIM, OUT_PAD)), res((1, OUT_PAD))],
        out_specs=(row((TILE_R, OUT_PAD)), row((TILE_R, OUT_PAD))),
        out_shape=(jax.ShapeDtypeStruct((R_pad, OUT_PAD), jnp.float32),
                   jax.ShapeDtypeStruct((R_pad, OUT_PAD), jnp.float32)),
        compiler_params=pltpu.CompilerParams(dimension_semantics=("parallel",)),
        cost_estimate=pl.CostEstimate(flops=int(flops), transcendentals=int(trans),
                                      bytes_accessed=int(bytes_acc)),
    )(x_pad, b_pad, w1, b1, w2, b2, wf, bf)

    logits = raw[:R, :NC1]
    probs  = post[:R, :NC1]
    boxes_planar = post[:R, DELTA_OFF:DELTA_OFF + K4]          # [R, 4*K] planar
    pred_boxes = boxes_planar.reshape(R, 4, K_REG).transpose(0, 2, 1)  # [R, K, 4]
    return logits, probs, pred_boxes


# ------------------- ROIAlign as separable bilinear matmuls ------------------
def _interp_weights(coords, length):
    """coords: [R, P] float -> bilinear weight matrix [R, P, length]."""
    c = jnp.clip(coords, 0.0, length - 1.0)
    c0 = jnp.floor(c)
    frac = c - c0
    i0 = c0.astype(jnp.int32)
    i1 = jnp.minimum(i0 + 1, length - 1)
    idx = jnp.arange(length, dtype=jnp.int32)
    w0 = (1.0 - frac)[..., None] * (idx[None, None, :] == i0[..., None])
    w1 = frac[..., None] * (idx[None, None, :] == i1[..., None])
    return w0 + w1


def roi_align(feat_nhwc, boxes, batch_idx, spatial_scale, P):
    """ROIAlignV2 (aligned=True, 1 sample/bin) via two batched matmuls.

    feat_nhwc: [N, H, W, C]; boxes: [R, 4] xyxy image coords -> [R, P, P, C]."""
    N, H, W, C = feat_nhwc.shape
    imgs = feat_nhwc[batch_idx]                                   # [R, H, W, C]

    x1 = boxes[:, 0] * spatial_scale - 0.5
    y1 = boxes[:, 1] * spatial_scale - 0.5
    x2 = boxes[:, 2] * spatial_scale - 0.5
    y2 = boxes[:, 3] * spatial_scale - 0.5
    bin_w = (x2 - x1) / P
    bin_h = (y2 - y1) / P
    j = jnp.arange(P, dtype=jnp.float32) + 0.5
    xs = x1[:, None] + j[None, :] * bin_w[:, None]                # [R, P]
    ys = y1[:, None] + j[None, :] * bin_h[:, None]                # [R, P]

    wy = _interp_weights(ys, H)                                   # [R, P, H]
    wx = _interp_weights(xs, W)                                   # [R, P, W]

    # pooled[r, py, px, c] = sum_{h,w} wy[r,py,h] * wx[r,px,w] * imgs[r,h,w,c]
    tmp = jnp.einsum('rph,rhwc->rpwc', wy, imgs)
    pooled = jnp.einsum('rqw,rpwc->rpqc', wx, tmp)                # [R, P, P, C]
    return pooled


# --------------------------- StandardROIHeads.forward ------------------------
def standard_roi_heads_forward(features_nchw, proposal_boxes, params):
    """Inference path of StandardROIHeads._forward_box + FastRCNNOutputs.inference.

    features_nchw: [N, C, H, W]; proposal_boxes: [N, R_i, 4] xyxy image coords.
    """
    N, C, H, W = features_nchw.shape
    Ri = proposal_boxes.shape[1]
    boxes_flat = proposal_boxes.reshape(N * Ri, 4)
    batch_idx = jnp.repeat(jnp.arange(N, dtype=jnp.int32), Ri)

    # box_pooler (ROIAlign)
    feat_nhwc = jnp.transpose(features_nchw, (0, 2, 3, 1))
    pooled = roi_align(feat_nhwc, boxes_flat, batch_idx,
                       spatial_scale=1.0 / FEAT_STRIDE, P=POOLER_RES)  # [R,P,P,C]
    # match PyTorch's [R, C, P, P].flatten(1)
    pooled = jnp.transpose(pooled, (0, 3, 1, 2)).reshape(N * Ri, -1)   # [R, C*P*P]

    # box_head + box_predictor + softmax + box decode  (fused Pallas kernel)
    logits, probs, pred_boxes = box_head_predict_decode(pooled, boxes_flat, params)

    scores = probs[:, :-1]                          # drop background column
    keep = scores > SCORE_THRESH
    # TODO(synk): per-class NMS + top-k (test_detections_per_img) not implemented.
    return {"box_features": pooled,
            "pred_class_logits": logits,
            "pred_probs": probs,
            "pred_boxes": pred_boxes,
            "scores": scores,
            "keep_mask": keep}


# ------------------------------ plain-JAX reference --------------------------
def _reference_head_and_decode(pooled, boxes, params):
    h = jnp.maximum(pooled @ params["w1"] + params["b1"], 0.0)
    h = jnp.maximum(h @ params["w2"] + params["b2"], 0.0)
    logits = h @ params["wc"] + params["bc"]
    deltas = h @ params["wb"] + params["bb"]
    probs = jax.nn.softmax(logits, axis=-1)

    R = boxes.shape[0]
    K = deltas.shape[1] // 4
    widths  = boxes[:, 2] - boxes[:, 0]
    heights = boxes[:, 3] - boxes[:, 1]
    ctr_x   = boxes[:, 0] + 0.5 * widths
    ctr_y   = boxes[:, 1] + 0.5 * heights
    d = deltas.reshape(R, K, 4)
    dx = d[..., 0] / BBOX_REG_W[0]
    dy = d[..., 1] / BBOX_REG_W[1]
    dw = jnp.minimum(d[..., 2] / BBOX_REG_W[2], SCALE_CLAMP)
    dh = jnp.minimum(d[..., 3] / BBOX_REG_W[3], SCALE_CLAMP)
    pcx = dx * widths[:, None] + ctr_x[:, None]
    pcy = dy * heights[:, None] + ctr_y[:, None]
    pw = jnp.exp(dw) * widths[:, None]
    ph = jnp.exp(dh) * heights[:, None]
    boxes_out = jnp.stack([jnp.clip(pcx - 0.5 * pw, 0.0, float(IMG_W)),
                           jnp.clip(pcy - 0.5 * ph, 0.0, float(IMG_H)),
                           jnp.clip(pcx + 0.5 * pw, 0.0, float(IMG_W)),
                           jnp.clip(pcy + 0.5 * ph, 0.0, float(IMG_H))], axis=-1)
    return logits, probs, boxes_out


# --------------------------------- params ------------------------------------
def init_params(key):
    d_in = FEAT_CHANNELS * POOLER_RES * POOLER_RES          # 128
    ks = jax.random.split(key, 4)
    return {
        "w1": jax.random.normal(ks[0], (d_in, FC_DIM), jnp.float32) * 0.05,
        "b1": jnp.zeros((1, FC_DIM), jnp.float32),
        "w2": jax.random.normal(ks[1], (FC_DIM, FC_DIM), jnp.float32) * 0.05,
        "b2": jnp.zeros((1, FC_DIM), jnp.float32),
        "wc": jax.random.normal(ks[2], (FC_DIM, NC1), jnp.float32) * 0.01,
        "bc": jnp.zeros((1, NC1), jnp.float32),
        "wb": jax.random.normal(ks[3], (FC_DIM, 4 * K_REG), jnp.float32) * 0.001,
        "bb": jnp.zeros((1, 4 * K_REG), jnp.float32),
    }


if __name__ == "__main__":
    key = jax.random.PRNGKey(0)
    k_feat, k_box, k_param = jax.random.split(key, 3)

    # features dict {"p3": [N, C, H, W]} (NCHW like PyTorch)
    features = jax.random.normal(
        k_feat, (N_IMAGES, FEAT_CHANNELS, IMG_H // FEAT_STRIDE, IMG_W // FEAT_STRIDE),
        jnp.float32)

    # proposal boxes in image coordinates (x1, y1, x2, y2)
    kx, ky, kw, kh = jax.random.split(k_box, 4)
    x1 = jax.random.uniform(kx, (N_IMAGES, R_PER_IMAGE), minval=0.0, maxval=40.0)
    y1 = jax.random.uniform(ky, (N_IMAGES, R_PER_IMAGE), minval=0.0, maxval=40.0)
    bw = jax.random.uniform(kw, (N_IMAGES, R_PER_IMAGE), minval=6.0, maxval=20.0)
    bh = jax.random.uniform(kh, (N_IMAGES, R_PER_IMAGE), minval=6.0, maxval=20.0)
    proposal_boxes = jnp.stack(
        [x1, y1, jnp.minimum(x1 + bw, IMG_W - 1.0), jnp.minimum(y1 + bh, IMG_H - 1.0)],
        axis=-1)

    params = init_params(k_param)

    fwd = jax.jit(standard_roi_heads_forward)
    out = fwd(features, proposal_boxes, params)
    jax.block_until_ready(out)

    R_total = N_IMAGES * R_PER_IMAGE
    assert out["pred_class_logits"].shape == (R_total, NC1)
    assert out["pred_probs"].shape == (R_total, NC1)
    assert out["pred_boxes"].shape == (R_total, K_REG, 4)
    assert out["scores"].shape == (R_total, NUM_CLASSES)

    # numerical check vs plain-JAX f32 reference (bf16 matmuls => loose tol)
    boxes_flat = proposal_boxes.reshape(R_total, 4)
    ref_logits, ref_probs, ref_boxes = _reference_head_and_decode(
        out["box_features"], boxes_flat, params)
    assert float(jnp.max(jnp.abs(out["pred_class_logits"] - ref_logits))) < 5e-2
    assert float(jnp.max(jnp.abs(out["pred_probs"] - ref_probs))) < 5e-2
    assert float(jnp.max(jnp.abs(out["pred_boxes"] - ref_boxes))) < 1e-1

    print("KERNEL_OK")
</pallas_src>

<mosaic_0001>
module attributes {stable_mosaic.version = 11 : i64} {
  func.func @_fused_head_kernel(%arg0: i32, %arg1: memref<128x128xbf16, #tpu.memory_space<vmem>>, %arg2: memref<128x4xf32, #tpu.memory_space<vmem>>, %arg3: memref<128x128xbf16, #tpu.memory_space<vmem>>, %arg4: memref<1x128xf32, #tpu.memory_space<vmem>>, %arg5: memref<128x128xbf16, #tpu.memory_space<vmem>>, %arg6: memref<1x128xf32, #tpu.memory_space<vmem>>, %arg7: memref<128x128xbf16, #tpu.memory_space<vmem>>, %arg8: memref<1x128xf32, #tpu.memory_space<vmem>>, %arg9: memref<128x128xf32, #tpu.memory_space<vmem>>, %arg10: memref<128x128xf32, #tpu.memory_space<vmem>>) attributes {dimension_semantics = [#tpu.dimension_semantics<parallel>], iteration_bounds = array<i64: 1>, scalar_prefetch = 0 : i64, scratch_operands = 0 : i64, tpu.core_type = #tpu.core_type<tc>, window_params = [{transform_indices = @transform_0, window_bounds = array<i64: 128, 128>}, {transform_indices = @transform_1, window_bounds = array<i64: 128, 4>}, {pipeline_mode = #tpu.pipeline_mode<synchronous>, transform_indices = @transform_2, window_bounds = array<i64: 128, 128>}, {pipeline_mode = #tpu.pipeline_mode<synchronous>, transform_indices = @transform_3, window_bounds = array<i64: 1, 128>}, {pipeline_mode = #tpu.pipeline_mode<synchronous>, transform_indices = @transform_4, window_bounds = array<i64: 128, 128>}, {pipeline_mode = #tpu.pipeline_mode<synchronous>, transform_indices = @transform_5, window_bounds = array<i64: 1, 128>}, {pipeline_mode = #tpu.pipeline_mode<synchronous>, transform_indices = @transform_6, window_bounds = array<i64: 128, 128>}, {pipeline_mode = #tpu.pipeline_mode<synchronous>, transform_indices = @transform_7, window_bounds = array<i64: 1, 128>}, {transform_indices = @transform_8, window_bounds = array<i64: 128, 128>}, {transform_indices = @transform_9, window_bounds = array<i64: 128, 128>}]} {
    %c0 = arith.constant 0 : index
    %c0_0 = arith.constant 0 : index
    %0 = vector.load %arg1[%c0, %c0_0] : memref<128x128xbf16, #tpu.memory_space<vmem>>, vector<128x128xbf16>
    %c0_1 = arith.constant 0 : index
    %c0_2 = arith.constant 0 : index
    %1 = vector.load %arg3[%c0_1, %c0_2] : memref<128x128xbf16, #tpu.memory_space<vmem>>, vector<128x128xbf16>
    %cst = arith.constant dense<0.000000e+00> : vector<128x128xf32>
    %2 = tpu.matmul %0, %1, %cst {dimension_numbers = #tpu.dot_dimension_numbers<[1], [0], [0], [1], [0, 0, 1, 1], [], []>} : vector<128x128xbf16>, vector<128x128xbf16>, vector<128x128xf32> -> vector<128x128xf32>
    %c0_3 = arith.constant 0 : index
    %c0_4 = arith.constant 0 : index
    %3 = vector.load %arg4[%c0_3, %c0_4] : memref<1x128xf32, #tpu.memory_space<vmem>>, vector<1x128xf32>
    %4 = vector.broadcast %3 : vector<1x128xf32> to vector<128x128xf32>
    %5 = arith.addf %2, %4 : vector<128x128xf32>
    %cst_5 = arith.constant 0.000000e+00 : f32
    %6 = vector.broadcast %cst_5 : f32 to vector<128x128xf32>
    %7 = arith.maximumf %5, %6 : vector<128x128xf32>
    %8 = arith.truncf %7 : vector<128x128xf32> to vector<128x128xbf16>
    %c0_6 = arith.constant 0 : index
    %c0_7 = arith.constant 0 : index
    %9 = vector.load %arg5[%c0_6, %c0_7] : memref<128x128xbf16, #tpu.memory_space<vmem>>, vector<128x128xbf16>
    %cst_8 = arith.constant dense<0.000000e+00> : vector<128x128xf32>
    %10 = tpu.matmul %8, %9, %cst_8 {dimension_numbers = #tpu.dot_dimension_numbers<[1], [0], [0], [1], [0, 0, 1, 1], [], []>} : vector<128x128xbf16>, vector<128x128xbf16>, vector<128x128xf32> -> vector<128x128xf32>
    %c0_9 = arith.constant 0 : index
    %c0_10 = arith.constant 0 : index
    %11 = vector.load %arg6[%c0_9, %c0_10] : memref<1x128xf32, #tpu.memory_space<vmem>>, vector<1x128xf32>
    %12 = vector.broadcast %11 : vector<1x128xf32> to vector<128x128xf32>
    %13 = arith.addf %10, %12 : vector<128x128xf32>
    %cst_11 = arith.constant 0.000000e+00 : f32
    %14 = vector.broadcast %cst_11 : f32 to vector<128x128xf32>
    %15 = arith.maximumf %13, %14 : vector<128x128xf32>
    %16 = arith.truncf %15 : vector<128x128xf32> to vector<128x128xbf16>
    %c0_12 = arith.constant 0 : index
    %c0_13 = arith.constant 0 : index
    %17 = vector.load %arg7[%c0_12, %c0_13] : memref<128x128xbf16, #tpu.memory_space<vmem>>, vector<128x128xbf16>
    %cst_14 = arith.constant dense<0.000000e+00> : vector<128x128xf32>
    %18 = tpu.matmul %16, %17, %cst_14 {dimension_numbers = #tpu.dot_dimension_numbers<[1], [0], [0], [1], [0, 0, 1, 1], [], []>} : vector<128x128xbf16>, vector<128x128xbf16>, vector<128x128xf32> -> vector<128x128xf32>
    %c0_15 = arith.constant 0 : index
    %c0_16 = arith.constant 0 : index
    %19 = vector.load %arg8[%c0_15, %c0_16] : memref<1x128xf32, #tpu.memory_space<vmem>>, vector<1x128xf32>
    %20 = vector.broadcast %19 : vector<1x128xf32> to vector<128x128xf32>
    %21 = arith.addf %18, %20 : vector<128x128xf32>
    %c0_17 = arith.constant 0 : index
    %c0_18 = arith.constant 0 : index
    %22 = vector.load %arg9[%c0_17, %c0_18] : memref<128x128xf32, #tpu.memory_space<vmem>>, vector<128x128xf32>
    tpu.vector_store %arg9[%c0_17, %c0_18], %21 {strides = array<i32>} : memref<128x128xf32, #tpu.memory_space<vmem>>, vector<128x128xf32>,
    %23 = vector.extract_strided_slice %21 {offsets = [0, 0], sizes = [128, 9], strides = [1, 1]} : vector<128x128xf32> to vector<128x9xf32>
    %cst_19 = arith.constant dense<0xFF800000> : vector<128xf32>
    %24 = vector.multi_reduction <maximumf>, %23, %cst_19 [1] : vector<128x9xf32> to vector<128xf32>
    %25 = vector.shape_cast %24 : vector<128xf32> to vector<128x1xf32>
    %26 = vector.broadcast %25 : vector<128x1xf32> to vector<128x9xf32>
    %27 = arith.subf %23, %26 : vector<128x9xf32>
    %28 = math.exp %27 : vector<128x9xf32>
    %cst_20 = arith.constant dense<0.000000e+00> : vector<128xf32>
    %29 = vector.multi_reduction <add>, %28, %cst_20 [1] : vector<128x9xf32> to vector<128xf32>
    %30 = vector.shape_cast %29 : vector<128xf32> to vector<128x1xf32>
    %31 = tpu.reciprocal %30 {approx = true} : vector<128x1xf32> -> vector<128x1xf32>
    %32 = vector.broadcast %31 : vector<128x1xf32> to vector<128x9xf32>
    %33 = arith.mulf %28, %32 : vector<128x9xf32>
    %c0_21 = arith.constant 0 : index
    %c0_22 = arith.constant 0 : index
    %34 = vector.load %arg2[%c0_21, %c0_22] : memref<128x4xf32, #tpu.memory_space<vmem>>, vector<128x4xf32>
    %35 = vector.extract_strided_slice %34 {offsets = [0, 2], sizes = [128, 1], strides = [1, 1]} : vector<128x4xf32> to vector<128x1xf32>
    %36 = vector.extract_strided_slice %34 {offsets = [0, 0], sizes = [128, 1], strides = [1, 1]} : vector<128x4xf32> to vector<128x1xf32>
    %37 = arith.subf %35, %36 : vector<128x1xf32>
    %38 = vector.extract_strided_slice %34 {offsets = [0, 3], sizes = [128, 1], strides = [1, 1]} : vector<128x4xf32> to vector<128x1xf32>
    %39 = vector.extract_strided_slice %34 {offsets = [0, 1], sizes = [128, 1], strides = [1, 1]} : vector<128x4xf32> to vector<128x1xf32>
    %40 = arith.subf %38, %39 : vector<128x1xf32>
    %41 = vector.extract_strided_slice %34 {offsets = [0, 0], sizes = [128, 1], strides = [1, 1]} : vector<128x4xf32> to vector<128x1xf32>
    %cst_23 = arith.constant 5.000000e-01 : f32
    %42 = vector.broadcast %cst_23 : f32 to vector<128x1xf32>
    %43 = arith.mulf %42, %37 : vector<128x1xf32>
    %44 = arith.addf %41, %43 : vector<128x1xf32>
    %45 = vector.extract_strided_slice %34 {offsets = [0, 1], sizes = [128, 1], strides = [1, 1]} : vector<128x4xf32> to vector<128x1xf32>
    %cst_24 = arith.constant 5.000000e-01 : f32
    %46 = vector.broadcast %cst_24 : f32 to vector<128x1xf32>
    %47 = arith.mulf %46, %40 : vector<128x1xf32>
    %48 = arith.addf %45, %47 : vector<128x1xf32>
    %49 = vector.extract_strided_slice %21 {offsets = [0, 16], sizes = [128, 8], strides = [1, 1]} : vector<128x128xf32> to vector<128x8xf32>
    %cst_25 = arith.constant 1.000000e+01 : f32
    %50 = vector.broadcast %cst_25 : f32 to vector<128x8xf32>
    %51 = arith.divf %49, %50 : vector<128x8xf32>
    %52 = vector.extract_strided_slice %21 {offsets = [0, 24], sizes = [128, 8], strides = [1, 1]} : vector<128x128xf32> to vector<128x8xf32>
    %cst_26 = arith.constant 1.000000e+01 : f32
    %53 = vector.broadcast %cst_26 : f32 to vector<128x8xf32>
    %54 = arith.divf %52, %53 : vector<128x8xf32>
    %55 = vector.extract_strided_slice %21 {offsets = [0, 32], sizes = [128, 8], strides = [1, 1]} : vector<128x128xf32> to vector<128x8xf32>
    %cst_27 = arith.constant 5.000000e+00 : f32
    %56 = vector.broadcast %cst_27 : f32 to vector<128x8xf32>
    %57 = arith.divf %55, %56 : vector<128x8xf32>
    %58 = vector.extract_strided_slice %21 {offsets = [0, 40], sizes = [128, 8], strides = [1, 1]} : vector<128x128xf32> to vector<128x8xf32>
    %cst_28 = arith.constant 5.000000e+00 : f32
    %59 = vector.broadcast %cst_28 : f32 to vector<128x8xf32>
    %60 = arith.divf %58, %59 : vector<128x8xf32>
    %cst_29 = arith.constant 4.13516665 : f32
    %61 = vector.broadcast %cst_29 : f32 to vector<128x8xf32>
    %62 = arith.minimumf %57, %61 : vector<128x8xf32>
    %cst_30 = arith.constant 4.13516665 : f32
    %63 = vector.broadcast %cst_30 : f32 to vector<128x8xf32>
    %64 = arith.minimumf %60, %63 : vector<128x8xf32>
    %65 = vector.broadcast %37 : vector<128x1xf32> to vector<128x8xf32>
    %66 = arith.mulf %51, %65 : vector<128x8xf32>
    %67 = vector.broadcast %44 : vector<128x1xf32> to vector<128x8xf32>
    %68 = arith.addf %66, %67 : vector<128x8xf32>
    %69 = vector.broadcast %40 : vector<128x1xf32> to vector<128x8xf32>
    %70 = arith.mulf %54, %69 : vector<128x8xf32>
    %71 = vector.broadcast %48 : vector<128x1xf32> to vector<128x8xf32>
    %72 = arith.addf %70, %71 : vector<128x8xf32>
    %73 = math.exp %62 : vector<128x8xf32>
    %74 = vector.broadcast %37 : vector<128x1xf32> to vector<128x8xf32>
    %75 = arith.mulf %73, %74 : vector<128x8xf32>
    %76 = math.exp %64 : vector<128x8xf32>
    %77 = vector.broadcast %40 : vector<128x1xf32> to vector<128x8xf32>
    %78 = arith.mulf %76, %77 : vector<128x8xf32>
    %cst_31 = arith.constant 5.000000e-01 : f32
    %79 = vector.broadcast %cst_31 : f32 to vector<128x8xf32>
    %80 = arith.mulf %79, %75 : vector<128x8xf32>
    %81 = arith.subf %68, %80 : vector<128x8xf32>
    %cst_32 = arith.constant 0.000000e+00 : f32
    %cst_33 = arith.constant 6.400000e+01 : f32
    %82 = vector.broadcast %cst_32 : f32 to vector<128x8xf32>
    %83 = arith.maximumf %82, %81 : vector<128x8xf32>
    %84 = vector.broadcast %cst_33 : f32 to vector<128x8xf32>
    %85 = arith.minimumf %84, %83 : vector<128x8xf32>
    %cst_34 = arith.constant 5.000000e-01 : f32
    %86 = vector.broadcast %cst_34 : f32 to vector<128x8xf32>
    %87 = arith.mulf %86, %78 : vector<128x8xf32>
    %88 = arith.subf %72, %87 : vector<128x8xf32>
    %cst_35 = arith.constant 0.000000e+00 : f32
    %cst_36 = arith.constant 6.400000e+01 : f32
    %89 = vector.broadcast %cst_35 : f32 to vector<128x8xf32>
    %90 = arith.maximumf %89, %88 : vector<128x8xf32>
    %91 = vector.broadcast %cst_36 : f32 to vector<128x8xf32>
    %92 = arith.minimumf %91, %90 : vector<128x8xf32>
    %cst_37 = arith.constant 5.000000e-01 : f32
    %93 = vector.broadcast %cst_37 : f32 to vector<128x8xf32>
    %94 = arith.mulf %93, %75 : vector<128x8xf32>
    %95 = arith.addf %68, %94 : vector<128x8xf32>
    %cst_38 = arith.constant 0.000000e+00 : f32
    %cst_39 = arith.constant 6.400000e+01 : f32
    %96 = vector.broadcast %cst_38 : f32 to vector<128x8xf32>
    %97 = arith.maximumf %96, %95 : vector<128x8xf32>
    %98 = vector.broadcast %cst_39 : f32 to vector<128x8xf32>
    %99 = arith.minimumf %98, %97 : vector<128x8xf32>
    %cst_40 = arith.constant 5.000000e-01 : f32
    %100 = vector.broadcast %cst_40 : f32 to vector<128x8xf32>
    %101 = arith.mulf %100, %78 : vector<128x8xf32>
    %102 = arith.addf %72, %101 : vector<128x8xf32>
    %cst_41 = arith.constant 0.000000e+00 : f32
    %cst_42 = arith.constant 6.400000e+01 : f32
    %103 = vector.broadcast %cst_41 : f32 to vector<128x8xf32>
    %104 = arith.maximumf %103, %102 : vector<128x8xf32>
    %105 = vector.broadcast %cst_42 : f32 to vector<128x8xf32>
    %106 = arith.minimumf %105, %104 : vector<128x8xf32>
    %cst_43 = arith.constant 0.000000e+00 : f32
    %107 = vector.broadcast %cst_43 : f32 to vector<128x7xf32>
    %cst_44 = arith.constant 0.000000e+00 : f32
    %108 = vector.broadcast %cst_44 : f32 to vector<128x80xf32>
    %109 = tpu.concatenate %33, %107, %85, %92, %99, %106, %108 in 1 : vector<128x9xf32>, vector<128x7xf32>, vector<128x8xf32>, vector<128x8xf32>, vector<128x8xf32>, vector<128x8xf32>, vector<128x80xf32> -> vector<128x128xf32>
    %c0_45 = arith.constant 0 : index
    %c0_46 = arith.constant 0 : index
    %110 = vector.load %arg10[%c0_45, %c0_46] : memref<128x128xf32, #tpu.memory_space<vmem>>, vector<128x128xf32>
    tpu.vector_store %arg10[%c0_45, %c0_46], %109 {strides = array<i32>} : memref<128x128xf32, #tpu.memory_space<vmem>>, vector<128x128xf32>,
    return
  }
  func.func @transform_0(%arg0: i32) -> (i32, i32) {
    %c0_i32 = arith.constant 0 : i32
    %c0_i32_0 = arith.constant 0 : i32
    return %arg0, %c0_i32 : i32, i32
  }
  func.func @transform_1(%arg0: i32) -> (i32, i32) {
    %c0_i32 = arith.constant 0 : i32
    %c0_i32_0 = arith.constant 0 : i32
    return %arg0, %c0_i32 : i32, i32
  }
  func.func @transform_2(%arg0: i32) -> (i32, i32) {
    %c0_i32 = arith.constant 0 : i32
    %c0_i32_0 = arith.constant 0 : i32
    %c0_i32_1 = arith.constant 0 : i32
    return %c0_i32, %c0_i32_0 : i32, i32
  }
  func.func @transform_3(%arg0: i32) -> (i32, i32) {
    %c0_i32 = arith.constant 0 : i32
    %c0_i32_0 = arith.constant 0 : i32
    %c0_i32_1 = arith.constant 0 : i32
    return %c0_i32, %c0_i32_0 : i32, i32
  }
  func.func @transform_4(%arg0: i32) -> (i32, i32) {
    %c0_i32 = arith.constant 0 : i32
    %c0_i32_0 = arith.constant 0 : i32
    %c0_i32_1 = arith.constant 0 : i32
    return %c0_i32, %c0_i32_0 : i32, i32
  }
  func.func @transform_5(%arg0: i32) -> (i32, i32) {
    %c0_i32 = arith.constant 0 : i32
    %c0_i32_0 = arith.constant 0 : i32
    %c0_i32_1 = arith.constant 0 : i32
    return %c0_i32, %c0_i32_0 : i32, i32
  }
  func.func @transform_6(%arg0: i32) -> (i32, i32) {
    %c0_i32 = arith.constant 0 : i32
    %c0_i32_0 = arith.constant 0 : i32
    %c0_i32_1 = arith.constant 0 : i32
    return %c0_i32, %c0_i32_0 : i32, i32
  }
  func.func @transform_7(%arg0: i32) -> (i32, i32) {
    %c0_i32 = arith.constant 0 : i32
    %c0_i32_0 = arith.constant 0 : i32
    %c0_i32_1 = arith.constant 0 : i32
    return %c0_i32, %c0_i32_0 : i32, i32
  }
  func.func @transform_8(%arg0: i32) -> (i32, i32) {
    %c0_i32 = arith.constant 0 : i32
    %c0_i32_0 = arith.constant 0 : i32
    return %arg0, %c0_i32 : i32, i32
  }
  func.func @transform_9(%arg0: i32) -> (i32, i32) {
    %c0_i32 = arith.constant 0 : i32
    %c0_i32_0 = arith.constant 0 : i32
    return %arg0, %c0_i32 : i32, i32
  }
}

</mosaic_0001>

<llo_original>
// kernel: standard_roi_heads_forward.1
$region0: #{standard_roi_heads_forward.1}
  #allocation0 [shape = 'u32[]', space=smem, size = 0x4, offset = 0x4, fixed_abs, tag = 'smem constant byte address 0x4 - core index']
  #allocation1 [shape = 'u32[144,128]{1,0:T(1,128)}', space=vmem, size = 0x12000, scoped, tag = 'internal scratch']
  %s0 = inlined_call_operand.vmem [shape: bf16[128,128], index: 0, kind: input, shape index: {}]
  %s1 = inlined_call_operand.vmem [shape: f32[128,4], index: 1, kind: input, shape index: {}]
  %s2 = inlined_call_operand.vmem [shape: bf16[128,128], index: 2, kind: input, shape index: {}]
  %s3 = inlined_call_operand.vmem [shape: f32[1,128], index: 3, kind: input, shape index: {}]
  %s4 = inlined_call_operand.vmem [shape: bf16[128,128], index: 4, kind: input, shape index: {}]
  %s5 = inlined_call_operand.vmem [shape: f32[1,128], index: 5, kind: input, shape index: {}]
  %s6 = inlined_call_operand.vmem [shape: bf16[128,128], index: 6, kind: input, shape index: {}]
  %s7 = inlined_call_operand.vmem [shape: f32[1,128], index: 7, kind: input, shape index: {}]
  %s8 = inlined_call_operand.vmem [shape: f32[128,128], index: 8, kind: output, shape index: {0}]
  %s9 = inlined_call_operand.vmem [shape: f32[128,128], index: 9, kind: output, shape index: {1}]
  %10 = xla_tuple %s8, %s9
  %s11 = sld [smem:[#allocation0]]
  $region50: #{standard_roi_heads_forward.1} parent=0
    _
  %s13 = ssub.s32 1, %s11
  %s14 = scalar_select 0, %s13, %s11
  // Predicated region
  $region2: #{standard_roi_heads_forward.1} parent=0 // pred_check
    _
  $region3: #{standard_roi_heads_forward.1} parent=0 // pred_check_branch
    %16 = sbr.rel (0) target = $region5
  $region4: #{standard_roi_heads_forward.1} parent=0 // pred_region
    _
  $region5: #{standard_roi_heads_forward.1} parent=0 // pred_fallthru
    _
  // Predicated region
  $region6: #{standard_roi_heads_forward.1} parent=0 // pred_check
    _
  $region7: #{standard_roi_heads_forward.1} parent=0 // pred_check_branch
    %18 = sbr.rel (0) target = $region9
  $region8: #{standard_roi_heads_forward.1} parent=0 // pred_region
    _
  $region9: #{standard_roi_heads_forward.1} parent=0 // pred_fallthru
    _
  // Predicated region
  $region10: #{standard_roi_heads_forward.1} parent=0 // pred_check
    _
  $region11: #{standard_roi_heads_forward.1} parent=0 // pred_check_branch
    %20 = sbr.rel (0) target = $region13
  $region12: #{standard_roi_heads_forward.1} parent=0 // pred_region
    _
  $region13: #{standard_roi_heads_forward.1} parent=0 // pred_fallthru
    _
  // Predicated region
  $region14: #{standard_roi_heads_forward.1} parent=0 // pred_check
    _
  $region15: #{standard_roi_heads_forward.1} parent=0 // pred_check_branch
    %22 = sbr.rel (0) target = $region17
  $region16: #{standard_roi_heads_forward.1} parent=0 // pred_region
    _
  $region17: #{standard_roi_heads_forward.1} parent=0 // pred_fallthru
    _
  // Predicated region
  $region18: #{standard_roi_heads_forward.1} parent=0 // pred_check
    _
  $region19: #{standard_roi_heads_forward.1} parent=0 // pred_check_branch
    %24 = sbr.rel (0) target = $region21
  $region20: #{standard_roi_heads_forward.1} parent=0 // pred_region
    _
  $region21: #{standard_roi_heads_forward.1} parent=0 // pred_fallthru
    _
  // Predicated region
  $region22: #{standard_roi_heads_forward.1} parent=0 // pred_check
    _
  $region23: #{standard_roi_heads_forward.1} parent=0 // pred_check_branch
    %26 = sbr.rel (0) target = $region25
  $region24: #{standard_roi_heads_forward.1} parent=0 // pred_region
    _
  $region25: #{standard_roi_heads_forward.1} parent=0 // pred_fallthru
    _
  // Predicated region
  $region26: #{standard_roi_heads_forward.1} parent=0 // pred_check
    _
  $region27: #{standard_roi_heads_forward.1} parent=0 // pred_check_branch
    %28 = sbr.rel (0) target = $region29
  $region28: #{standard_roi_heads_forward.1} parent=0 // pred_region
    _
  $region29: #{standard_roi_heads_forward.1} parent=0 // pred_fallthru
    _
  // Predicated region
  $region30: #{standard_roi_heads_forward.1} parent=0 // pred_check
    _
  $region31: #{standard_roi_heads_forward.1} parent=0 // pred_check_branch
    %30 = sbr.rel (0) target = $region33
  $region32: #{standard_roi_heads_forward.1} parent=0 // pred_region
    _
  $region33: #{standard_roi_heads_forward.1} parent=0 // pred_fallthru
    _
  %v32 = vld [vmem:[%s0] sm:$0xf]
  %v33 = vld [vmem:[%s0 + $0x4] sm:$0xf]
  %v34 = vld [vmem:[%s0 + $0x8] sm:$0xf]
  %v35 = vld [vmem:[%s0 + $0xc] sm:$0xf]
  %v36 = vld [vmem:[%s0 + $0x10] sm:$0xf]
  %v37 = vld [vmem:[%s0 + $0x14] sm:$0xf]
  %v38 = vld [vmem:[%s0 + $0x18] sm:$0xf]
  %v39 = vld [vmem:[%s0 + $0x1c] sm:$0xf]
  %v40 = vld [vmem:[%s0 + $0x20] sm:$0xf]
  %v41 = vld [vmem:[%s0 + $0x24] sm:$0xf]
  %v42 = vld [vmem:[%s0 + $0x28] sm:$0xf]
  %v43 = vld [vmem:[%s0 + $0x2c] sm:$0xf]
  %v44 = vld [vmem:[%s0 + $0x30] sm:$0xf]
  %v45 = vld [vmem:[%s0 + $0x34] sm:$0xf]
  %v46 = vld [vmem:[%s0 + $0x38] sm:$0xf]
  %v47 = vld [vmem:[%s0 + $0x3c] sm:$0xf]
  %v48 = vld [vmem:[%s2] sm:$0xf]
  %v49 = vld [vmem:[%s2 + $0x4] sm:$0xf]
  %v50 = vld [vmem:[%s2 + $0x8] sm:$0xf]
  %v51 = vld [vmem:[%s2 + $0xc] sm:$0xf]
  %v52 = vld [vmem:[%s2 + $0x10] sm:$0xf]
  %v53 = vld [vmem:[%s2 + $0x14] sm:$0xf]
  %v54 = vld [vmem:[%s2 + $0x18] sm:$0xf]
  %v55 = vld [vmem:[%s2 + $0x1c] sm:$0xf]
  %v56 = vld [vmem:[%s2 + $0x20] sm:$0xf]
  %v57 = vld [vmem:[%s2 + $0x24] sm:$0xf]
  %v58 = vld [vmem:[%s2 + $0x28] sm:$0xf]
  %v59 = vld [vmem:[%s2 + $0x2c] sm:$0xf]
  %v60 = vld [vmem:[%s2 + $0x30] sm:$0xf]
  %v61 = vld [vmem:[%s2 + $0x34] sm:$0xf]
  %v62 = vld [vmem:[%s2 + $0x38] sm:$0xf]
  %v63 = vld [vmem:[%s2 + $0x3c] sm:$0xf]
  %v64 = vld [vmem:[%s3] sm:$0x1]
  %v66 = vlaneseq
  %v67 = vshrl.u32 %v66, 7
  %v68 = vsub.s32 0, %v67
  %v69 = vrot.slane %v64, %v68
  %v87 = vunpack.c.l.b16 %v32
  %v88 = vunpack.c.l.b16 %v33
  %v89 = vunpack.c.l.b16 %v34
  %v90 = vunpack.c.l.b16 %v35
  %v91 = vunpack.c.l.b16 %v36
  %v92 = vunpack.c.l.b16 %v37
  %v93 = vunpack.c.l.b16 %v38
  %v94 = vunpack.c.l.b16 %v39
  %v95 = vunpack.c.l.b16 %v40
  %v96 = vunpack.c.l.b16 %v41
  %v97 = vunpack.c.l.b16 %v42
  %v98 = vunpack.c.l.b16 %v43
  %v99 = vunpack.c.l.b16 %v44
  %v100 = vunpack.c.l.b16 %v45
  %v101 = vunpack.c.l.b16 %v46
  %v102 = vunpack.c.l.b16 %v47
  %v103 = vpack.c.b16 %v88, %v87
  %v104 = vpack.c.b16 %v90, %v89
  %v105 = vpack.c.b16 %v92, %v91
  %v106 = vpack.c.b16 %v94, %v93
  %v107 = vpack.c.b16 %v96, %v95
  %v108 = vpack.c.b16 %v98, %v97
  %v109 = vpack.c.b16 %v100, %v99
  %v110 = vpack.c.b16 %v102, %v101
  %v135 = vunpack.c.l.b16 %v48
  %v136 = vunpack.c.l.b16 %v49
  %v137 = vunpack.c.l.b16 %v50
  %v138 = vunpack.c.l.b16 %v51
  %v139 = vunpack.c.l.b16 %v52
  %v140 = vunpack.c.l.b16 %v53
  %v141 = vunpack.c.l.b16 %v54
  %v142 = vunpack.c.l.b16 %v55
  %v143 = vunpack.c.l.b16 %v56
  %v144 = vunpack.c.l.b16 %v57
  %v145 = vunpack.c.l.b16 %v58
  %v146 = vunpack.c.l.b16 %v59
  %v147 = vunpack.c.l.b16 %v60
  %v148 = vunpack.c.l.b16 %v61
  %v149 = vunpack.c.l.b16 %v62
  %v150 = vunpack.c.l.b16 %v63
  %v151 = vpack.c.b16 %v136, %v135
  %v152 = vpack.c.b16 %v138, %v137
  %v153 = vpack.c.b16 %v140, %v139
  %v154 = vpack.c.b16 %v142, %v141
  %v155 = vpack.c.b16 %v144, %v143
  %v156 = vpack.c.b16 %v146, %v145
  %v157 = vpack.c.b16 %v148, %v147
  %v158 = vpack.c.b16 %v150, %v149
  %167 = vmatprep.subr.bf16.mxu0 0
  %168 = vmatpush1.bf16.msra.mxu0 %v158
  %169 = vmatprep.subr.bf16.mxu0 0
  %170 = vmatpush1.bf16.msra.mxu0 %v157
  %171 = vmatprep.subr.bf16.mxu0 0
  %172 = vmatpush1.bf16.msra.mxu0 %v156
  %173 = vmatprep.subr.bf16.mxu0 0
  %174 = vmatpush1.bf16.msra.mxu0 %v155
  %175 = vmatprep.subr.bf16.mxu0 0
  %176 = vmatpush1.bf16.msra.mxu0 %v154
  %177 = vmatprep.subr.bf16.mxu0 0
  %178 = vmatpush1.bf16.msra.mxu0 %v153
  %179 = vmatprep.subr.bf16.mxu0 0
  %180 = vmatpush1.bf16.msra.mxu0 %v152
  %181 = vmatprep.subr.bf16.mxu0 0
  %182 = vmatpush1.bf16.msra.mxu0 %v151
  %183 = vmatprep.subr.bf16.mxu0 0
  %184 = vmatpush2.bf16.msra.mxu0 0
  %185 = vmatprep.subr.bf16.mxu0 0
  %186 = vmatpush2.bf16.msra.mxu0 0
  %187 = vmatprep.subr.bf16.mxu0 0
  %188 = vmatpush2.bf16.msra.mxu0 0
  %189 = vmatprep.subr.bf16.mxu0 0
  %190 = vmatpush2.bf16.msra.mxu0 0
  %191 = vmatprep.subr.bf16.mxu0 0
  %192 = vmatpush2.bf16.msra.mxu0 0
  %193 = vmatprep.subr.bf16.mxu0 0
  %194 = vmatpush2.bf16.msra.mxu0 0
  %195 = vmatprep.subr.bf16.mxu0 0
  %196 = vmatpush2.bf16.msra.mxu0 0
  %197 = vmatprep.subr.bf16.mxu0 0
  %198 = vmatpush2.bf16.msra.mxu0 0
  %199 = vmatprep.mubr.bf16.mxu0 0
  %200 = vmatmul.mubr.bf16.gmra.mxu0 %v103
  %v201 = vpop.f32.mrf.mxu0
  %v202 = vadd.f32 %v69, %v201
  %v203 = vpop.f32.mrf.mxu0
  %v204 = vpop.f32.mrf.mxu0
  %v205 = vadd.f32 %v69, %v204
  %v206 = vpop.f32.mrf.mxu0
  %207 = vmatprep.mubr.bf16.mxu0 0
  %208 = vmatmul.mubr.bf16.gmra.mxu0 %v104
  %v209 = vpop.f32.mrf.mxu0
  %v210 = vadd.f32 %v69, %v209
  %v211 = vpop.f32.mrf.mxu0
  %v212 = vpop.f32.mrf.mxu0
  %v213 = vadd.f32 %v69, %v212
  %v214 = vpop.f32.mrf.mxu0
  %215 = vmatprep.mubr.bf16.mxu0 0
  %216 = vmatmul.mubr.bf16.gmra.mxu0 %v105
  %v217 = vpop.f32.mrf.mxu0
  %v218 = vadd.f32 %v69, %v217
  %v219 = vpop.f32.mrf.mxu0
  %v220 = vpop.f32.mrf.mxu0
  %v221 = vadd.f32 %v69, %v220
  %v222 = vpop.f32.mrf.mxu0
  %223 = vmatprep.mubr.bf16.mxu0 0
  %224 = vmatmul.mubr.bf16.gmra.mxu0 %v106
  %v225 = vpop.f32.mrf.mxu0
  %v226 = vadd.f32 %v69, %v225
  %v227 = vpop.f32.mrf.mxu0
  %v228 = vpop.f32.mrf.mxu0
  %v229 = vadd.f32 %v69, %v228
  %v230 = vpop.f32.mrf.mxu0
  %231 = vmatprep.mubr.bf16.mxu0 0
  %232 = vmatmul.mubr.bf16.gmra.mxu0 %v107
  %v233 = vpop.f32.mrf.mxu0
  %v234 = vadd.f32 %v69, %v233
  %v235 = vpop.f32.mrf.mxu0
  %v236 = vpop.f32.mrf.mxu0
  %v237 = vadd.f32 %v69, %v236
  %v238 = vpop.f32.mrf.mxu0
  %239 = vmatprep.mubr.bf16.mxu0 0
  %240 = vmatmul.mubr.bf16.gmra.mxu0 %v108
  %v241 = vpop.f32.mrf.mxu0
  %v242 = vadd.f32 %v69, %v241
  %v243 = vpop.f32.mrf.mxu0
  %v244 = vpop.f32.mrf.mxu0
  %v245 = vadd.f32 %v69, %v244
  %v246 = vpop.f32.mrf.mxu0
  %247 = vmatprep.mubr.bf16.mxu0 0
  %248 = vmatmul.mubr.bf16.gmra.mxu0 %v109
  %v249 = vpop.f32.mrf.mxu0
  %v250 = vadd.f32 %v69, %v249
  %v251 = vpop.f32.mrf.mxu0
  %v252 = vpop.f32.mrf.mxu0
  %v253 = vadd.f32 %v69, %v252
  %v254 = vpop.f32.mrf.mxu0
  %255 = vmatprep.mubr.bf16.mxu0 0
  %256 = vmatmul.mubr.bf16.gmra.mxu0 %v110
  %v257 = vpop.f32.mrf.mxu0
  %v258 = vadd.f32 %v69, %v257
  %v259 = vpop.f32.mrf.mxu0
  %v260 = vpop.f32.mrf.mxu0
  %v261 = vadd.f32 %v69, %v260
  %v262 = vpop.f32.mrf.mxu0
  %263 = vdwg.mxu0
  %v264 = vmax.f32 %v202, 0.0
  %v265 = vmax.f32 %v205, 0.0
  %v266 = vmax.f32 %v210, 0.0
  %v267 = vmax.f32 %v213, 0.0
  %v268 = vmax.f32 %v218, 0.0
  %v269 = vmax.f32 %v221, 0.0
  %v270 = vmax.f32 %v226, 0.0
  %v271 = vmax.f32 %v229, 0.0
  %v272 = vmax.f32 %v234, 0.0
  %v273 = vmax.f32 %v237, 0.0
  %v274 = vmax.f32 %v242, 0.0
  %v275 = vmax.f32 %v245, 0.0
  %v276 = vmax.f32 %v250, 0.0
  %v277 = vmax.f32 %v253, 0.0
  %v278 = vmax.f32 %v258, 0.0
  %v279 = vmax.f32 %v261, 0.0
  %v280 = vpack.c.bf16 %v265, %v264
  %v281 = vpack.c.bf16 %v267, %v266
  %v282 = vpack.c.bf16 %v269, %v268
  %v283 = vpack.c.bf16 %v271, %v270
  %v284 = vpack.c.bf16 %v273, %v272
  %v285 = vpack.c.bf16 %v275, %v274
  %v286 = vpack.c.bf16 %v277, %v276
  %v287 = vpack.c.bf16 %v279, %v278
  %v288 = vld [vmem:[%s4] sm:$0xf]
  %v289 = vld [vmem:[%s4 + $0x4] sm:$0xf]
  %v290 = vld [vmem:[%s4 + $0x8] sm:$0xf]
  %v291 = vld [vmem:[%s4 + $0xc] sm:$0xf]
  %v292 = vld [vmem:[%s4 + $0x10] sm:$0xf]
  %v293 = vld [vmem:[%s4 + $0x14] sm:$0xf]
  %v294 = vld [vmem:[%s4 + $0x18] sm:$0xf]
  %v295 = vld [vmem:[%s4 + $0x1c] sm:$0xf]
  %v296 = vld [vmem:[%s4 + $0x20] sm:$0xf]
  %v297 = vld [vmem:[%s4 + $0x24] sm:$0xf]
  %v298 = vld [vmem:[%s4 + $0x28] sm:$0xf]
  %v299 = vld [vmem:[%s4 + $0x2c] sm:$0xf]
  %v300 = vld [vmem:[%s4 + $0x30] sm:$0xf]
  %v301 = vld [vmem:[%s4 + $0x34] sm:$0xf]
  %v302 = vld [vmem:[%s4 + $0x38] sm:$0xf]
  %v303 = vld [vmem:[%s4 + $0x3c] sm:$0xf]
  %v304 = vld [vmem:[%s5] sm:$0x1]
  %v306 = vlaneseq
  %v307 = vshrl.u32 %v306, 7
  %v308 = vsub.s32 0, %v307
  %v309 = vrot.slane %v304, %v308
  %v327 = vunpack.c.l.b16 %v288
  %v328 = vunpack.c.l.b16 %v289
  %v329 = vunpack.c.l.b16 %v290
  %v330 = vunpack.c.l.b16 %v291
  %v331 = vunpack.c.l.b16 %v292
  %v332 = vunpack.c.l.b16 %v293
  %v333 = vunpack.c.l.b16 %v294
  %v334 = vunpack.c.l.b16 %v295
  %v335 = vunpack.c.l.b16 %v296
  %v336 = vunpack.c.l.b16 %v297
  %v337 = vunpack.c.l.b16 %v298
  %v338 = vunpack.c.l.b16 %v299
  %v339 = vunpack.c.l.b16 %v300
  %v340 = vunpack.c.l.b16 %v301
  %v341 = vunpack.c.l.b16 %v302
  %v342 = vunpack.c.l.b16 %v303
  %v343 = vpack.c.b16 %v328, %v327
  %v344 = vpack.c.b16 %v330, %v329
  %v345 = vpack.c.b16 %v332, %v331
  %v346 = vpack.c.b16 %v334, %v333
  %v347 = vpack.c.b16 %v336, %v335
  %v348 = vpack.c.b16 %v338, %v337
  %v349 = vpack.c.b16 %v340, %v339
  %v350 = vpack.c.b16 %v342, %v341
  %359 = vmatprep.subr.bf16.mxu0 0
  %360 = vmatpush1.bf16.msra.mxu0 %v350
  %361 = vmatprep.subr.bf16.mxu0 0
  %362 = vmatpush1.bf16.msra.mxu0 %v349
  %363 = vmatprep.subr.bf16.mxu0 0
  %364 = vmatpush1.bf16.msra.mxu0 %v348
  %365 = vmatprep.subr.bf16.mxu0 0
  %366 = vmatpush1.bf16.msra.mxu0 %v347
  %367 = vmatprep.subr.bf16.mxu0 0
  %368 = vmatpush1.bf16.msra.mxu0 %v346
  %369 = vmatprep.subr.bf16.mxu0 0
  %370 = vmatpush1.bf16.msra.mxu0 %v345
  %371 = vmatprep.subr.bf16.mxu0 0
  %372 = vmatpush1.bf16.msra.mxu0 %v344
  %373 = vmatprep.subr.bf16.mxu0 0
  %374 = vmatpush1.bf16.msra.mxu0 %v343
  %375 = vmatprep.subr.bf16.mxu0 0
  %376 = vmatpush2.bf16.msra.mxu0 0
  %377 = vmatprep.subr.bf16.mxu0 0
  %378 = vmatpush2.bf16.msra.mxu0 0
  %379 = vmatprep.subr.bf16.mxu0 0
  %380 = vmatpush2.bf16.msra.mxu0 0
  %381 = vmatprep.subr.bf16.mxu0 0
  %382 = vmatpush2.bf16.msra.mxu0 0
  %383 = vmatprep.subr.bf16.mxu0 0
  %384 = vmatpush2.bf16.msra.mxu0 0
  %385 = vmatprep.subr.bf16.mxu0 0
  %386 = vmatpush2.bf16.msra.mxu0 0
  %387 = vmatprep.subr.bf16.mxu0 0
  %388 = vmatpush2.bf16.msra.mxu0 0
  %389 = vmatprep.subr.bf16.mxu0 0
  %390 = vmatpush2.bf16.msra.mxu0 0
  %391 = vmatprep.mubr.bf16.mxu0 0
  %392 = vmatmul.mubr.bf16.gmra.mxu0 %v280
  %v393 = vpop.f32.mrf.mxu0
  %v394 = vadd.f32 %v309, %v393
  %v395 = vpop.f32.mrf.mxu0
  %v396 = vpop.f32.mrf.mxu0
  %v397 = vadd.f32 %v309, %v396
  %v398 = vpop.f32.mrf.mxu0
  %399 = vmatprep.mubr.bf16.mxu0 0
  %400 = vmatmul.mubr.bf16.gmra.mxu0 %v281
  %v401 = vpop.f32.mrf.mxu0
  %v402 = vadd.f32 %v309, %v401
  %v403 = vpop.f32.mrf.mxu0
  %v404 = vpop.f32.mrf.mxu0
  %v405 = vadd.f32 %v309, %v404
  %v406 = vpop.f32.mrf.mxu0
  %407 = vmatprep.mubr.bf16.mxu0 0
  %408 = vmatmul.mubr.bf16.gmra.mxu0 %v282
  %v409 = vpop.f32.mrf.mxu0
  %v410 = vadd.f32 %v309, %v409
  %v411 = vpop.f32.mrf.mxu0
  %v412 = vpop.f32.mrf.mxu0
  %v413 = vadd.f32 %v309, %v412
  %v414 = vpop.f32.mrf.mxu0
  %415 = vmatprep.mubr.bf16.mxu0 0
  %416 = vmatmul.mubr.bf16.gmra.mxu0 %v283
  %v417 = vpop.f32.mrf.mxu0
  %v418 = vadd.f32 %v309, %v417
  %v419 = vpop.f32.mrf.mxu0
  %v420 = vpop.f32.mrf.mxu0
  %v421 = vadd.f32 %v309, %v420
  %v422 = vpop.f32.mrf.mxu0
  %423 = vmatprep.mubr.bf16.mxu0 0
  %424 = vmatmul.mubr.bf16.gmra.mxu0 %v284
  %v425 = vpop.f32.mrf.mxu0
  %v426 = vadd.f32 %v309, %v425
  %v427 = vpop.f32.mrf.mxu0
  %v428 = vpop.f32.mrf.mxu0
  %v429 = vadd.f32 %v309, %v428
  %v430 = vpop.f32.mrf.mxu0
  %431 = vmatprep.mubr.bf16.mxu0 0
  %432 = vmatmul.mubr.bf16.gmra.mxu0 %v285
  %v433 = vpop.f32.mrf.mxu0
  %v434 = vadd.f32 %v309, %v433
  %v435 = vpop.f32.mrf.mxu0
  %v436 = vpop.f32.mrf.mxu0
  %v437 = vadd.f32 %v309, %v436
  %v438 = vpop.f32.mrf.mxu0
  %439 = vmatprep.mubr.bf16.mxu0 0
  %440 = vmatmul.mubr.bf16.gmra.mxu0 %v286
  %v441 = vpop.f32.mrf.mxu0
  %v442 = vadd.f32 %v309, %v441
  %v443 = vpop.f32.mrf.mxu0
  %v444 = vpop.f32.mrf.mxu0
  %v445 = vadd.f32 %v309, %v444
  %v446 = vpop.f32.mrf.mxu0
  %447 = vmatprep.mubr.bf16.mxu0 0
  %448 = vmatmul.mubr.bf16.gmra.mxu0 %v287
  %v449 = vpop.f32.mrf.mxu0
  %v450 = vadd.f32 %v309, %v449
  %v451 = vpop.f32.mrf.mxu0
  %v452 = vpop.f32.mrf.mxu0
  %v453 = vadd.f32 %v309, %v452
  %v454 = vpop.f32.mrf.mxu0
  %455 = vdwg.mxu0
  %v456 = vmax.f32 %v394, 0.0
  %v457 = vmax.f32 %v397, 0.0
  %v458 = vmax.f32 %v402, 0.0
  %v459 = vmax.f32 %v405, 0.0
  %v460 = vmax.f32 %v410, 0.0
  %v461 = vmax.f32 %v413, 0.0
  %v462 = vmax.f32 %v418, 0.0
  %v463 = vmax.f32 %v421, 0.0
  %v464 = vmax.f32 %v426, 0.0
  %v465 = vmax.f32 %v429, 0.0
  %v466 = vmax.f32 %v434, 0.0
  %v467 = vmax.f32 %v437, 0.0
  %v468 = vmax.f32 %v442, 0.0
  %v469 = vmax.f32 %v445, 0.0
  %v470 = vmax.f32 %v450, 0.0
  %v471 = vmax.f32 %v453, 0.0
  %v472 = vpack.c.bf16 %v457, %v456
  %v473 = vpack.c.bf16 %v459, %v458
  %v474 = vpack.c.bf16 %v461, %v460
  %v475 = vpack.c.bf16 %v463, %v462
  %v476 = vpack.c.bf16 %v465, %v464
  %v477 = vpack.c.bf16 %v467, %v466
  %v478 = vpack.c.bf16 %v469, %v468
  %v479 = vpack.c.bf16 %v471, %v470
  %v480 = vld [vmem:[%s6] sm:$0xf]
  %v481 = vld [vmem:[%s6 + $0x4] sm:$0xf]
  %v482 = vld [vmem:[%s6 + $0x8] sm:$0xf]
  %v483 = vld [vmem:[%s6 + $0xc] sm:$0xf]
  %v484 = vld [vmem:[%s6 + $0x10] sm:$0xf]
  %v485 = vld [vmem:[%s6 + $0x14] sm:$0xf]
  %v486 = vld [vmem:[%s6 + $0x18] sm:$0xf]
  %v487 = vld [vmem:[%s6 + $0x1c] sm:$0xf]
  %v488 = vld [vmem:[%s6 + $0x20] sm:$0xf]
  %v489 = vld [vmem:[%s6 + $0x24] sm:$0xf]
  %v490 = vld [vmem:[%s6 + $0x28] sm:$0xf]
  %v491 = vld [vmem:[%s6 + $0x2c] sm:$0xf]
  %v492 = vld [vmem:[%s6 + $0x30] sm:$0xf]
  %v493 = vld [vmem:[%s6 + $0x34] sm:$0xf]
  %v494 = vld [vmem:[%s6 + $0x38] sm:$0xf]
  %v495 = vld [vmem:[%s6 + $0x3c] sm:$0xf]
  %v496 = vld [vmem:[%s7] sm:$0x1]
  %v498 = vlaneseq
  %v499 = vshrl.u32 %v498, 7
  %v500 = vsub.s32 0, %v499
  %v501 = vrot.slane %v496, %v500
  %v519 = vunpack.c.l.b16 %v480
  %v520 = vunpack.c.l.b16 %v481
  %v521 = vunpack.c.l.b16 %v482
  %v522 = vunpack.c.l.b16 %v483
  %v523 = vunpack.c.l.b16 %v484
  %v524 = vunpack.c.l.b16 %v485
  %v525 = vunpack.c.l.b16 %v486
  %v526 = vunpack.c.l.b16 %v487
  %v527 = vunpack.c.l.b16 %v488
  %v528 = vunpack.c.l.b16 %v489
  %v529 = vunpack.c.l.b16 %v490
  %v530 = vunpack.c.l.b16 %v491
  %v531 = vunpack.c.l.b16 %v492
  %v532 = vunpack.c.l.b16 %v493
  %v533 = vunpack.c.l.b16 %v494
  %v534 = vunpack.c.l.b16 %v495
  %v535 = vpack.c.b16 %v520, %v519
  %v536 = vpack.c.b16 %v522, %v521
  %v537 = vpack.c.b16 %v524, %v523
  %v538 = vpack.c.b16 %v526, %v525
  %v539 = vpack.c.b16 %v528, %v527
  %v540 = vpack.c.b16 %v530, %v529
  %v541 = vpack.c.b16 %v532, %v531
  %v542 = vpack.c.b16 %v534, %v533
  %551 = vmatprep.subr.bf16.mxu0 0
  %552 = vmatpush1.bf16.msra.mxu0 %v542
  %553 = vmatprep.subr.bf16.mxu0 0
  %554 = vmatpush1.bf16.msra.mxu0 %v541
  %555 = vmatprep.subr.bf16.mxu0 0
  %556 = vmatpush1.bf16.msra.mxu0 %v540
  %557 = vmatprep.subr.bf16.mxu0 0
  %558 = vmatpush1.bf16.msra.mxu0 %v539
  %559 = vmatprep.subr.bf16.mxu0 0
  %560 = vmatpush1.bf16.msra.mxu0 %v538
  %561 = vmatprep.subr.bf16.mxu0 0
  %562 = vmatpush1.bf16.msra.mxu0 %v537
  %563 = vmatprep.subr.bf16.mxu0 0
  %564 = vmatpush1.bf16.msra.mxu0 %v536
  %565 = vmatprep.subr.bf16.mxu0 0
  %566 = vmatpush1.bf16.msra.mxu0 %v535
  %567 = vmatprep.subr.bf16.mxu0 0
  %568 = vmatpush2.bf16.msra.mxu0 0
  %569 = vmatprep.subr.bf16.mxu0 0
  %570 = vmatpush2.bf16.msra.mxu0 0
  %571 = vmatprep.subr.bf16.mxu0 0
  %572 = vmatpush2.bf16.msra.mxu0 0
  %573 = vmatprep.subr.bf16.mxu0 0
  %574 = vmatpush2.bf16.msra.mxu0 0
  %575 = vmatprep.subr.bf16.mxu0 0
  %576 = vmatpush2.bf16.msra.mxu0 0
  %577 = vmatprep.subr.bf16.mxu0 0
  %578 = vmatpush2.bf16.msra.mxu0 0
  %579 = vmatprep.subr.bf16.mxu0 0
  %580 = vmatpush2.bf16.msra.mxu0 0
  %581 = vmatprep.subr.bf16.mxu0 0
  %582 = vmatpush2.bf16.msra.mxu0 0
  %583 = vmatprep.mubr.bf16.mxu0 0
  %584 = vmatmul.mubr.bf16.gmra.mxu0 %v472
  %v585 = vpop.f32.mrf.mxu0
  %v586 = vadd.f32 %v501, %v585
  %v587 = vpop.f32.mrf.mxu0
  %v588 = vpop.f32.mrf.mxu0
  %v589 = vadd.f32 %v501, %v588
  %v590 = vpop.f32.mrf.mxu0
  %591 = vmatprep.mubr.bf16.mxu0 0
  %592 = vmatmul.mubr.bf16.gmra.mxu0 %v473
  %v593 = vpop.f32.mrf.mxu0
  %v594 = vadd.f32 %v501, %v593
  %v595 = vpop.f32.mrf.mxu0
  %v596 = vpop.f32.mrf.mxu0
  %v597 = vadd.f32 %v501, %v596
  %v598 = vpop.f32.mrf.mxu0
  %599 = vmatprep.mubr.bf16.mxu0 0
  %600 = vmatmul.mubr.bf16.gmra.mxu0 %v474
  %v601 = vpop.f32.mrf.mxu0
  %v602 = vadd.f32 %v501, %v601
  %v603 = vpop.f32.mrf.mxu0
  %v604 = vpop.f32.mrf.mxu0
  %v605 = vadd.f32 %v501, %v604
  %v606 = vpop.f32.mrf.mxu0
  %607 = vmatprep.mubr.bf16.mxu0 0
  %608 = vmatmul.mubr.bf16.gmra.mxu0 %v475
  %v609 = vpop.f32.mrf.mxu0
  %v610 = vadd.f32 %v501, %v609
  %v611 = vpop.f32.mrf.mxu0
  %v612 = vpop.f32.mrf.mxu0
  %v613 = vadd.f32 %v501, %v612
  %v614 = vpop.f32.mrf.mxu0
  %615 = vmatprep.mubr.bf16.mxu0 0
  %616 = vmatmul.mubr.bf16.gmra.mxu0 %v476
  %v617 = vpop.f32.mrf.mxu0
  %v618 = vadd.f32 %v501, %v617
  %v619 = vpop.f32.mrf.mxu0
  %v620 = vpop.f32.mrf.mxu0
  %v621 = vadd.f32 %v501, %v620
  %v622 = vpop.f32.mrf.mxu0
  %623 = vmatprep.mubr.bf16.mxu0 0
  %624 = vmatmul.mubr.bf16.gmra.mxu0 %v477
  %v625 = vpop.f32.mrf.mxu0
  %v626 = vadd.f32 %v501, %v625
  %v627 = vpop.f32.mrf.mxu0
  %v628 = vpop.f32.mrf.mxu0
  %v629 = vadd.f32 %v501, %v628
  %v630 = vpop.f32.mrf.mxu0
  %631 = vmatprep.mubr.bf16.mxu0 0
  %632 = vmatmul.mubr.bf16.gmra.mxu0 %v478
  %v633 = vpop.f32.mrf.mxu0
  %v634 = vadd.f32 %v501, %v633
  %v635 = vpop.f32.mrf.mxu0
  %v636 = vpop.f32.mrf.mxu0
  %v637 = vadd.f32 %v501, %v636
  %v638 = vpop.f32.mrf.mxu0
  %639 = vmatprep.mubr.bf16.mxu0 0
  %640 = vmatmul.mubr.bf16.gmra.mxu0 %v479
  %v641 = vpop.f32.mrf.mxu0
  %v642 = vadd.f32 %v501, %v641
  %v643 = vpop.f32.mrf.mxu0
  %v644 = vpop.f32.mrf.mxu0
  %v645 = vadd.f32 %v501, %v644
  %v646 = vpop.f32.mrf.mxu0
  %647 = vdwg.mxu0
  %648 = vst [vmem:[%s8] sm:$0xff] %v586
  %649 = vst [vmem:[%s8 + $0x8] sm:$0xff] %v589
  %650 = vst [vmem:[%s8 + $0x10] sm:$0xff] %v594
  %651 = vst [vmem:[%s8 + $0x18] sm:$0xff] %v597
  %652 = vst [vmem:[%s8 + $0x20] sm:$0xff] %v602
  %653 = vst [vmem:[%s8 + $0x28] sm:$0xff] %v605
  %654 = vst [vmem:[%s8 + $0x30] sm:$0xff] %v610
  %655 = vst [vmem:[%s8 + $0x38] sm:$0xff] %v613
  %656 = vst [vmem:[%s8 + $0x40] sm:$0xff] %v618
  %657 = vst [vmem:[%s8 + $0x48] sm:$0xff] %v621
  %658 = vst [vmem:[%s8 + $0x50] sm:$0xff] %v626
  %659 = vst [vmem:[%s8 + $0x58] sm:$0xff] %v629
  %660 = vst [vmem:[%s8 + $0x60] sm:$0xff] %v634
  %661 = vst [vmem:[%s8 + $0x68] sm:$0xff] %v637
  %662 = vst [vmem:[%s8 + $0x70] sm:$0xff] %v642
  %663 = vst [vmem:[%s8 + $0x78] sm:$0xff] %v645
  %vm664 = vcmask 72704
  %v665 = vsel %vm664, %v586, -inf
  %666 = vmax.xlane.f32.xlu0 %v665
  %v667 = vpop.xlane.xlu0 %666
  %v668 = vsel %vm664, %v589, -inf
  %669 = vmax.xlane.f32.xlu0 %v668
  %v670 = vpop.xlane.xlu0 %669
  %v671 = vsel %vm664, %v594, -inf
  %672 = vmax.xlane.f32.xlu0 %v671
  %v673 = vpop.xlane.xlu0 %672
  %v674 = vsel %vm664, %v597, -inf
  %675 = vmax.xlane.f32.xlu0 %v674
  %v676 = vpop.xlane.xlu0 %675
  %v677 = vsel %vm664, %v602, -inf
  %678 = vmax.xlane.f32.xlu0 %v677
  %v679 = vpop.xlane.xlu0 %678
  %v680 = vsel %vm664, %v605, -inf
  %681 = vmax.xlane.f32.xlu0 %v680
  %v682 = vpop.xlane.xlu0 %681
  %v683 = vsel %vm664, %v610, -inf
  %684 = vmax.xlane.f32.xlu0 %v683
  %v685 = vpop.xlane.xlu0 %684
  %v686 = vsel %vm664, %v613, -inf
  %687 = vmax.xlane.f32.xlu0 %v686
  %v688 = vpop.xlane.xlu0 %687
  %v689 = vsel %vm664, %v618, -inf
  %690 = vmax.xlane.f32.xlu0 %v689
  %v691 = vpop.xlane.xlu0 %690
  %v692 = vsel %vm664, %v621, -inf
  %693 = vmax.xlane.f32.xlu0 %v692
  %v694 = vpop.xlane.xlu0 %693
  %v695 = vsel %vm664, %v626, -inf
  %696 = vmax.xlane.f32.xlu0 %v695
  %v697 = vpop.xlane.xlu0 %696
  %v698 = vsel %vm664, %v629, -inf
  %699 = vmax.xlane.f32.xlu0 %v698
  %v700 = vpop.xlane.xlu0 %699
  %v701 = vsel %vm664, %v634, -inf
  %702 = vmax.xlane.f32.xlu0 %v701
  %v703 = vpop.xlane.xlu0 %702
  %v704 = vsel %vm664, %v637, -inf
  %705 = vmax.xlane.f32.xlu0 %v704
  %v706 = vpop.xlane.xlu0 %705
  %v707 = vsel %vm664, %v642, -inf
  %708 = vmax.xlane.f32.xlu0 %v707
  %v709 = vpop.xlane.xlu0 %708
  %v710 = vsel %vm664, %v645, -inf
  %711 = vmax.xlane.f32.xlu0 %v710
  %v712 = vpop.xlane.xlu0 %711
  %v713 = vsub.f32 %v586, %v667
  %v714 = vsub.f32 %v589, %v670
  %v715 = vsub.f32 %v594, %v673
  %v716 = vsub.f32 %v597, %v676
  %v717 = vsub.f32 %v602, %v679
  %v718 = vsub.f32 %v605, %v682
  %v719 = vsub.f32 %v610, %v685
  %v720 = vsub.f32 %v613, %v688
  %v721 = vsub.f32 %v618, %v691
  %v722 = vsub.f32 %v621, %v694
  %v723 = vsub.f32 %v626, %v697
  %v724 = vsub.f32 %v629, %v700
  %v725 = vsub.f32 %v634, %v703
  %v726 = vsub.f32 %v637, %v706
  %v727 = vsub.f32 %v642, %v709
  %v728 = vsub.f32 %v645, %v712
  %v729 = vmul.f32 %v713, 1.442695
  %v730 = vpow.pop %v729
  %v731 = vmul.f32 %v714, 1.442695
  %v732 = vpow.pop %v731
  %v733 = vmul.f32 %v715, 1.442695
  %v734 = vpow.pop %v733
  %v735 = vmul.f32 %v716, 1.442695
  %v736 = vpow.pop %v735
  %v737 = vmul.f32 %v717, 1.442695
  %v738 = vpow.pop %v737
  %v739 = vmul.f32 %v718, 1.442695
  %v740 = vpow.pop %v739
  %v741 = vmul.f32 %v719, 1.442695
  %v742 = vpow.pop %v741
  %v743 = vmul.f32 %v720, 1.442695
  %v744 = vpow.pop %v743
  %v745 = vmul.f32 %v721, 1.442695
  %v746 = vpow.pop %v745
  %v747 = vmul.f32 %v722, 1.442695
  %v748 = vpow.pop %v747
  %v749 = vmul.f32 %v723, 1.442695
  %v750 = vpow.pop %v749
  %v751 = vmul.f32 %v724, 1.442695
  %v752 = vpow.pop %v751
  %v753 = vmul.f32 %v725, 1.442695
  %v754 = vpow.pop %v753
  %v755 = vmul.f32 %v726, 1.442695
  %v756 = vpow.pop %v755
  %v757 = vmul.f32 %v727, 1.442695
  %v758 = vpow.pop %v757
  %v759 = vmul.f32 %v728, 1.442695
  %v760 = vpow.pop %v759
  %v761 = vsel %vm664, %v730, 0.0
  %762 = vadd.xlane.f32.xlu0 %v761
  %v763 = vpop.xlane.xlu0 %762
  %v764 = vsel %vm664, %v732, 0.0
  %765 = vadd.xlane.f32.xlu0 %v764
  %v766 = vpop.xlane.xlu0 %765
  %v767 = vsel %vm664, %v734, 0.0
  %768 = vadd.xlane.f32.xlu0 %v767
  %v769 = vpop.xlane.xlu0 %768
  %v770 = vsel %vm664, %v736, 0.0
  %771 = vadd.xlane.f32.xlu0 %v770
  %v772 = vpop.xlane.xlu0 %771
  %v773 = vsel %vm664, %v738, 0.0
  %774 = vadd.xlane.f32.xlu0 %v773
  %v775 = vpop.xlane.xlu0 %774
  %v776 = vsel %vm664, %v740, 0.0
  %777 = vadd.xlane.f32.xlu0 %v776
  %v778 = vpop.xlane.xlu0 %777
  %v779 = vsel %vm664, %v742, 0.0
  %780 = vadd.xlane.f32.xlu0 %v779
  %v781 = vpop.xlane.xlu0 %780
  %v782 = vsel %vm664, %v744, 0.0
  %783 = vadd.xlane.f32.xlu0 %v782
  %v784 = vpop.xlane.xlu0 %783
  %v785 = vsel %vm664, %v746, 0.0
  %786 = vadd.xlane.f32.xlu0 %v785
  %v787 = vpop.xlane.xlu0 %786
  %v788 = vsel %vm664, %v748, 0.0
  %789 = vadd.xlane.f32.xlu0 %v788
  %v790 = vpop.xlane.xlu0 %789
  %v791 = vsel %vm664, %v750, 0.0
  %792 = vadd.xlane.f32.xlu0 %v791
  %v793 = vpop.xlane.xlu0 %792
  %v794 = vsel %vm664, %v752, 0.0
  %795 = vadd.xlane.f32.xlu0 %v794
  %v796 = vpop.xlane.xlu0 %795
  %v797 = vsel %vm664, %v754, 0.0
  %798 = vadd.xlane.f32.xlu0 %v797
  %v799 = vpop.xlane.xlu0 %798
  %v800 = vsel %vm664, %v756, 0.0
  %801 = vadd.xlane.f32.xlu0 %v800
  %v802 = vpop.xlane.xlu0 %801
  %v803 = vsel %vm664, %v758, 0.0
  %804 = vadd.xlane.f32.xlu0 %v803
  %v805 = vpop.xlane.xlu0 %804
  %v806 = vsel %vm664, %v760, 0.0
  %807 = vadd.xlane.f32.xlu0 %v806
  %v808 = vpop.xlane.xlu0 %807
  %v809 = vrcp.pop %v763
  %v810 = vrcp.pop %v766
  %v811 = vrcp.pop %v769
  %v812 = vrcp.pop %v772
  %v813 = vrcp.pop %v775
  %v814 = vrcp.pop %v778
  %v815 = vrcp.pop %v781
  %v816 = vrcp.pop %v784
  %v817 = vrcp.pop %v787
  %v818 = vrcp.pop %v790
  %v819 = vrcp.pop %v793
  %v820 = vrcp.pop %v796
  %v821 = vrcp.pop %v799
  %v822 = vrcp.pop %v802
  %v823 = vrcp.pop %v805
  %v824 = vrcp.pop %v808
  %v825 = vmul.f32 %v730, %v809
  %v826 = vmul.f32 %v732, %v810
  %v827 = vmul.f32 %v734, %v811
  %v828 = vmul.f32 %v736, %v812
  %v829 = vmul.f32 %v738, %v813
  %v830 = vmul.f32 %v740, %v814
  %v831 = vmul.f32 %v742, %v815
  %v832 = vmul.f32 %v744, %v816
  %v833 = vmul.f32 %v746, %v817
  %v834 = vmul.f32 %v748, %v818
  %v835 = vmul.f32 %v750, %v819
  %v836 = vmul.f32 %v752, %v820
  %v837 = vmul.f32 %v754, %v821
  %v838 = vmul.f32 %v756, %v822
  %v839 = vmul.f32 %v758, %v823
  %v840 = vmul.f32 %v760, %v824
  %v841 = vld [vmem:[%s1] sm:$0xff]
  %v842 = vld [vmem:[%s1 + $0x8] sm:$0xff]
  %v843 = vld [vmem:[%s1 + $0x10] sm:$0xff]
  %v844 = vld [vmem:[%s1 + $0x18] sm:$0xff]
  %v845 = vld [vmem:[%s1 + $0x20] sm:$0xff]
  %v846 = vld [vmem:[%s1 + $0x28] sm:$0xff]
  %v847 = vld [vmem:[%s1 + $0x30] sm:$0xff]
  %v848 = vld [vmem:[%s1 + $0x38] sm:$0xff]
  %v849 = vld [vmem:[%s1 + $0x40] sm:$0xff]
  %v850 = vld [vmem:[%s1 + $0x48] sm:$0xff]
  %v851 = vld [vmem:[%s1 + $0x50] sm:$0xff]
  %v852 = vld [vmem:[%s1 + $0x58] sm:$0xff]
  %v853 = vld [vmem:[%s1 + $0x60] sm:$0xff]
  %v854 = vld [vmem:[%s1 + $0x68] sm:$0xff]
  %v855 = vld [vmem:[%s1 + $0x70] sm:$0xff]
  %v856 = vld [vmem:[%s1 + $0x78] sm:$0xff]
  %873 = vrot.lane.b32.xlu0 %v841, 2
  %v874 = vpop.permute.xlu0 %873
  %875 = vrot.lane.b32.xlu0 %v842, 2
  %v876 = vpop.permute.xlu0 %875
  %877 = vrot.lane.b32.xlu0 %v843, 2
  %v878 = vpop.permute.xlu0 %877
  %879 = vrot.lane.b32.xlu0 %v844, 2
  %v880 = vpop.permute.xlu0 %879
  %881 = vrot.lane.b32.xlu0 %v845, 2
  %v882 = vpop.permute.xlu0 %881
  %883 = vrot.lane.b32.xlu0 %v846, 2
  %v884 = vpop.permute.xlu0 %883
  %885 = vrot.lane.b32.xlu0 %v847, 2
  %v886 = vpop.permute.xlu0 %885
  %887 = vrot.lane.b32.xlu0 %v848, 2
  %v888 = vpop.permute.xlu0 %887
  %889 = vrot.lane.b32.xlu0 %v849, 2
  %v890 = vpop.permute.xlu0 %889
  %891 = vrot.lane.b32.xlu0 %v850, 2
  %v892 = vpop.permute.xlu0 %891
  %893 = vrot.lane.b32.xlu0 %v851, 2
  %v894 = vpop.permute.xlu0 %893
  %895 = vrot.lane.b32.xlu0 %v852, 2
  %v896 = vpop.permute.xlu0 %895
  %897 = vrot.lane.b32.xlu0 %v853, 2
  %v898 = vpop.permute.xlu0 %897
  %899 = vrot.lane.b32.xlu0 %v854, 2
  %v900 = vpop.permute.xlu0 %899
  %901 = vrot.lane.b32.xlu0 %v855, 2
  %v902 = vpop.permute.xlu0 %901
  %903 = vrot.lane.b32.xlu0 %v856, 2
  %v904 = vpop.permute.xlu0 %903
  %v921 = vsub.f32 %v841, %v874
  %v922 = vsub.f32 %v842, %v876
  %v923 = vsub.f32 %v843, %v878
  %v924 = vsub.f32 %v844, %v880
  %v925 = vsub.f32 %v845, %v882
  %v926 = vsub.f32 %v846, %v884
  %v927 = vsub.f32 %v847, %v886
  %v928 = vsub.f32 %v848, %v888
  %v929 = vsub.f32 %v849, %v890
  %v930 = vsub.f32 %v850, %v892
  %v931 = vsub.f32 %v851, %v894
  %v932 = vsub.f32 %v852, %v896
  %v933 = vsub.f32 %v853, %v898
  %v934 = vsub.f32 %v854, %v900
  %v935 = vsub.f32 %v855, %v902
  %v936 = vsub.f32 %v856, %v904
  %v937 = vmul.f32 %v921, 0.5
  %v938 = vmul.f32 %v922, 0.5
  %v939 = vmul.f32 %v923, 0.5
  %v940 = vmul.f32 %v924, 0.5
  %v941 = vmul.f32 %v925, 0.5
  %v942 = vmul.f32 %v926, 0.5
  %v943 = vmul.f32 %v927, 0.5
  %v944 = vmul.f32 %v928, 0.5
  %v945 = vmul.f32 %v929, 0.5
  %v946 = vmul.f32 %v930, 0.5
  %v947 = vmul.f32 %v931, 0.5
  %v948 = vmul.f32 %v932, 0.5
  %v949 = vmul.f32 %v933, 0.5
  %v950 = vmul.f32 %v934, 0.5
  %v951 = vmul.f32 %v935, 0.5
  %v952 = vmul.f32 %v936, 0.5
  %969 = vrot.lane.b32.xlu0 %v937, 126
  %v970 = vpop.permute.xlu0 %969
  %971 = vrot.lane.b32.xlu0 %v938, 126
  %v972 = vpop.permute.xlu0 %971
  %973 = vrot.lane.b32.xlu0 %v939, 126
  %v974 = vpop.permute.xlu0 %973
  %975 = vrot.lane.b32.xlu0 %v940, 126
  %v976 = vpop.permute.xlu0 %975
  %977 = vrot.lane.b32.xlu0 %v941, 126
  %v978 = vpop.permute.xlu0 %977
  %979 = vrot.lane.b32.xlu0 %v942, 126
  %v980 = vpop.permute.xlu0 %979
  %981 = vrot.lane.b32.xlu0 %v943, 126
  %v982 = vpop.permute.xlu0 %981
  %983 = vrot.lane.b32.xlu0 %v944, 126
  %v984 = vpop.permute.xlu0 %983
  %985 = vrot.lane.b32.xlu0 %v945, 126
  %v986 = vpop.permute.xlu0 %985
  %987 = vrot.lane.b32.xlu0 %v946, 126
  %v988 = vpop.permute.xlu0 %987
  %989 = vrot.lane.b32.xlu0 %v947, 126
  %v990 = vpop.permute.xlu0 %989
  %991 = vrot.lane.b32.xlu0 %v948, 126
  %v992 = vpop.permute.xlu0 %991
  %993 = vrot.lane.b32.xlu0 %v949, 126
  %v994 = vpop.permute.xlu0 %993
  %995 = vrot.lane.b32.xlu0 %v950, 126
  %v996 = vpop.permute.xlu0 %995
  %997 = vrot.lane.b32.xlu0 %v951, 126
  %v998 = vpop.permute.xlu0 %997
  %999 = vrot.lane.b32.xlu0 %v952, 126
  %v1000 = vpop.permute.xlu0 %999
  %v1017 = vadd.f32 %v841, %v970
  %v1018 = vadd.f32 %v842, %v972
  %v1019 = vadd.f32 %v843, %v974
  %v1020 = vadd.f32 %v844, %v976
  %v1021 = vadd.f32 %v845, %v978
  %v1022 = vadd.f32 %v846, %v980
  %v1023 = vadd.f32 %v847, %v982
  %v1024 = vadd.f32 %v848, %v984
  %v1025 = vadd.f32 %v849, %v986
  %v1026 = vadd.f32 %v850, %v988
  %v1027 = vadd.f32 %v851, %v990
  %v1028 = vadd.f32 %v852, %v992
  %v1029 = vadd.f32 %v853, %v994
  %v1030 = vadd.f32 %v854, %v996
  %v1031 = vadd.f32 %v855, %v998
  %v1032 = vadd.f32 %v856, %v1000
  %v1033 = vrcp.pop 10.0
  %v1034 = vmul.f32 %v586, %v1033
  %v1035 = vmul.f32 %v589, %v1033
  %v1036 = vmul.f32 %v594, %v1033
  %v1037 = vmul.f32 %v597, %v1033
  %v1038 = vmul.f32 %v602, %v1033
  %v1039 = vmul.f32 %v605, %v1033
  %v1040 = vmul.f32 %v610, %v1033
  %v1041 = vmul.f32 %v613, %v1033
  %v1042 = vmul.f32 %v618, %v1033
  %v1043 = vmul.f32 %v621, %v1033
  %v1044 = vmul.f32 %v626, %v1033
  %v1045 = vmul.f32 %v629, %v1033
  %v1046 = vmul.f32 %v634, %v1033
  %v1047 = vmul.f32 %v637, %v1033
  %v1048 = vmul.f32 %v642, %v1033
  %v1049 = vmul.f32 %v645, %v1033
  %v1050 = vrcp.pop 5.0
  %v1051 = vmul.f32 %v586, %v1050
  %v1052 = vmul.f32 %v589, %v1050
  %v1053 = vmul.f32 %v594, %v1050
  %v1054 = vmul.f32 %v597, %v1050
  %v1055 = vmul.f32 %v602, %v1050
  %v1056 = vmul.f32 %v605, %v1050
  %v1057 = vmul.f32 %v610, %v1050
  %v1058 = vmul.f32 %v613, %v1050
  %v1059 = vmul.f32 %v618, %v1050
  %v1060 = vmul.f32 %v621, %v1050
  %v1061 = vmul.f32 %v626, %v1050
  %v1062 = vmul.f32 %v629, %v1050
  %v1063 = vmul.f32 %v634, %v1050
  %v1064 = vmul.f32 %v637, %v1050
  %v1065 = vmul.f32 %v642, %v1050
  %v1066 = vmul.f32 %v645, %v1050
  %v1067 = vmin.f32 %v1051, 4.1351666
  %v1068 = vmin.f32 %v1052, 4.1351666
  %v1069 = vmin.f32 %v1053, 4.1351666
  %v1070 = vmin.f32 %v1054, 4.1351666
  %v1071 = vmin.f32 %v1055, 4.1351666
  %v1072 = vmin.f32 %v1056, 4.1351666
  %v1073 = vmin.f32 %v1057, 4.1351666
  %v1074 = vmin.f32 %v1058, 4.1351666
  %v1075 = vmin.f32 %v1059, 4.1351666
  %v1076 = vmin.f32 %v1060, 4.1351666
  %v1077 = vmin.f32 %v1061, 4.1351666
  %v1078 = vmin.f32 %v1062, 4.1351666
  %v1079 = vmin.f32 %v1063, 4.1351666
  %v1080 = vmin.f32 %v1064, 4.1351666
  %v1081 = vmin.f32 %v1065, 4.1351666
  %v1082 = vmin.f32 %v1066, 4.1351666
  %1084 = vset.pattern.permute.xlu0 2
  %1085 = vperm.xlu0 %1084, %v921
  %v1086 = vpop.permute.xlu0 %1085
  %1089 = vset.pattern.permute.xlu0 2
  %1090 = vperm.xlu0 %1089, %v922
  %v1091 = vpop.permute.xlu0 %1090
  %1094 = vset.pattern.permute.xlu0 2
  %1095 = vperm.xlu0 %1094, %v923
  %v1096 = vpop.permute.xlu0 %1095
  %1099 = vset.pattern.permute.xlu0 2
  %1100 = vperm.xlu0 %1099, %v924
  %v1101 = vpop.permute.xlu0 %1100
  %1104 = vset.pattern.permute.xlu0 2
  %1105 = vperm.xlu0 %1104, %v925
  %v1106 = vpop.permute.xlu0 %1105
  %1109 = vset.pattern.permute.xlu0 2
  %1110 = vperm.xlu0 %1109, %v926
  %v1111 = vpop.permute.xlu0 %1110
  %1114 = vset.pattern.permute.xlu0 2
  %1115 = vperm.xlu0 %1114, %v927
  %v1116 = vpop.permute.xlu0 %1115
  %1119 = vset.pattern.permute.xlu0 2
  %1120 = vperm.xlu0 %1119, %v928
  %v1121 = vpop.permute.xlu0 %1120
  %1124 = vset.pattern.permute.xlu0 2
  %1125 = vperm.xlu0 %1124, %v929
  %v1126 = vpop.permute.xlu0 %1125
  %1129 = vset.pattern.permute.xlu0 2
  %1130 = vperm.xlu0 %1129, %v930
  %v1131 = vpop.permute.xlu0 %1130
  %1134 = vset.pattern.permute.xlu0 2
  %1135 = vperm.xlu0 %1134, %v931
  %v1136 = vpop.permute.xlu0 %1135
  %1139 = vset.pattern.permute.xlu0 2
  %1140 = vperm.xlu0 %1139, %v932
  %v1141 = vpop.permute.xlu0 %1140
  %1144 = vset.pattern.permute.xlu0 2
  %1145 = vperm.xlu0 %1144, %v933
  %v1146 = vpop.permute.xlu0 %1145
  %1149 = vset.pattern.permute.xlu0 2
  %1150 = vperm.xlu0 %1149, %v934
  %v1151 = vpop.permute.xlu0 %1150
  %1154 = vset.pattern.permute.xlu0 2
  %1155 = vperm.xlu0 %1154, %v935
  %v1156 = vpop.permute.xlu0 %1155
  %1159 = vset.pattern.permute.xlu0 2
  %1160 = vperm.xlu0 %1159, %v936
  %v1161 = vpop.permute.xlu0 %1160
  %v1163 = vmul.f32 %v1034, %v1086
  %v1164 = vmul.f32 %v1035, %v1091
  %v1165 = vmul.f32 %v1036, %v1096
  %v1166 = vmul.f32 %v1037, %v1101
  %v1167 = vmul.f32 %v1038, %v1106
  %v1168 = vmul.f32 %v1039, %v1111
  %v1169 = vmul.f32 %v1040, %v1116
  %v1170 = vmul.f32 %v1041, %v1121
  %v1171 = vmul.f32 %v1042, %v1126
  %v1172 = vmul.f32 %v1043, %v1131
  %v1173 = vmul.f32 %v1044, %v1136
  %v1174 = vmul.f32 %v1045, %v1141
  %v1175 = vmul.f32 %v1046, %v1146
  %v1176 = vmul.f32 %v1047, %v1151
  %v1177 = vmul.f32 %v1048, %v1156
  %v1178 = vmul.f32 %v1049, %v1161
  %1180 = vset.pattern.permute.xlu0 0
  %1181 = vperm.xlu0 %1180, %v1017
  %v1182 = vpop.permute.xlu0 %1181
  %1185 = vset.pattern.permute.xlu0 0
  %1186 = vperm.xlu0 %1185, %v1018
  %v1187 = vpop.permute.xlu0 %1186
  %1190 = vset.pattern.permute.xlu0 0
  %1191 = vperm.xlu0 %1190, %v1019
  %v1192 = vpop.permute.xlu0 %1191
  %1195 = vset.pattern.permute.xlu0 0
  %1196 = vperm.xlu0 %1195, %v1020
  %v1197 = vpop.permute.xlu0 %1196
  %1200 = vset.pattern.permute.xlu0 0
  %1201 = vperm.xlu0 %1200, %v1021
  %v1202 = vpop.permute.xlu0 %1201
  %1205 = vset.pattern.permute.xlu0 0
  %1206 = vperm.xlu0 %1205, %v1022
  %v1207 = vpop.permute.xlu0 %1206
  %1210 = vset.pattern.permute.xlu0 0
  %1211 = vperm.xlu0 %1210, %v1023
  %v1212 = vpop.permute.xlu0 %1211
  %1215 = vset.pattern.permute.xlu0 0
  %1216 = vperm.xlu0 %1215, %v1024
  %v1217 = vpop.permute.xlu0 %1216
  %1220 = vset.pattern.permute.xlu0 0
  %1221 = vperm.xlu0 %1220, %v1025
  %v1222 = vpop.permute.xlu0 %1221
  %1225 = vset.pattern.permute.xlu0 0
  %1226 = vperm.xlu0 %1225, %v1026
  %v1227 = vpop.permute.xlu0 %1226
  %1230 = vset.pattern.permute.xlu0 0
  %1231 = vperm.xlu0 %1230, %v1027
  %v1232 = vpop.permute.xlu0 %1231
  %1235 = vset.pattern.permute.xlu0 0
  %1236 = vperm.xlu0 %1235, %v1028
  %v1237 = vpop.permute.xlu0 %1236
  %1240 = vset.pattern.permute.xlu0 0
  %1241 = vperm.xlu0 %1240, %v1029
  %v1242 = vpop.permute.xlu0 %1241
  %1245 = vset.pattern.permute.xlu0 0
  %1246 = vperm.xlu0 %1245, %v1030
  %v1247 = vpop.permute.xlu0 %1246
  %1250 = vset.pattern.permute.xlu0 0
  %1251 = vperm.xlu0 %1250, %v1031
  %v1252 = vpop.permute.xlu0 %1251
  %1255 = vset.pattern.permute.xlu0 0
  %1256 = vperm.xlu0 %1255, %v1032
  %v1257 = vpop.permute.xlu0 %1256
  %v1259 = vadd.f32 %v1163, %v1182
  %v1260 = vadd.f32 %v1164, %v1187
  %v1261 = vadd.f32 %v1165, %v1192
  %v1262 = vadd.f32 %v1166, %v1197
  %v1263 = vadd.f32 %v1167, %v1202
  %v1264 = vadd.f32 %v1168, %v1207
  %v1265 = vadd.f32 %v1169, %v1212
  %v1266 = vadd.f32 %v1170, %v1217
  %v1267 = vadd.f32 %v1171, %v1222
  %v1268 = vadd.f32 %v1172, %v1227
  %v1269 = vadd.f32 %v1173, %v1232
  %v1270 = vadd.f32 %v1174, %v1237
  %v1271 = vadd.f32 %v1175, %v1242
  %v1272 = vadd.f32 %v1176, %v1247
  %v1273 = vadd.f32 %v1177, %v1252
  %v1274 = vadd.f32 %v1178, %v1257
  %1275 = vset.pattern.permute.xlu0 3
  %1276 = vperm.xlu0 %1275, %v921
  %v1277 = vpop.permute.xlu0 %1276
  %1279 = vset.pattern.permute.xlu0 3
  %1280 = vperm.xlu0 %1279, %v922
  %v1281 = vpop.permute.xlu0 %1280
  %1283 = vset.pattern.permute.xlu0 3
  %1284 = vperm.xlu0 %1283, %v923
  %v1285 = vpop.permute.xlu0 %1284
  %1287 = vset.pattern.permute.xlu0 3
  %1288 = vperm.xlu0 %1287, %v924
  %v1289 = vpop.permute.xlu0 %1288
  %1291 = vset.pattern.permute.xlu0 3
  %1292 = vperm.xlu0 %1291, %v925
  %v1293 = vpop.permute.xlu0 %1292
  %1295 = vset.pattern.permute.xlu0 3
  %1296 = vperm.xlu0 %1295, %v926
  %v1297 = vpop.permute.xlu0 %1296
  %1299 = vset.pattern.permute.xlu0 3
  %1300 = vperm.xlu0 %1299, %v927
  %v1301 = vpop.permute.xlu0 %1300
  %1303 = vset.pattern.permute.xlu0 3
  %1304 = vperm.xlu0 %1303, %v928
  %v1305 = vpop.permute.xlu0 %1304
  %1307 = vset.pattern.permute.xlu0 3
  %1308 = vperm.xlu0 %1307, %v929
  %v1309 = vpop.permute.xlu0 %1308
  %1311 = vset.pattern.permute.xlu0 3
  %1312 = vperm.xlu0 %1311, %v930
  %v1313 = vpop.permute.xlu0 %1312
  %1315 = vset.pattern.permute.xlu0 3
  %1316 = vperm.xlu0 %1315, %v931
  %v1317 = vpop.permute.xlu0 %1316
  %1319 = vset.pattern.permute.xlu0 3
  %1320 = vperm.xlu0 %1319, %v932
  %v1321 = vpop.permute.xlu0 %1320
  %1323 = vset.pattern.permute.xlu0 3
  %1324 = vperm.xlu0 %1323, %v933
  %v1325 = vpop.permute.xlu0 %1324
  %1327 = vset.pattern.permute.xlu0 3
  %1328 = vperm.xlu0 %1327, %v934
  %v1329 = vpop.permute.xlu0 %1328
  %1331 = vset.pattern.permute.xlu0 3
  %1332 = vperm.xlu0 %1331, %v935
  %v1333 = vpop.permute.xlu0 %1332
  %1335 = vset.pattern.permute.xlu0 3
  %1336 = vperm.xlu0 %1335, %v936
  %v1337 = vpop.permute.xlu0 %1336
  %v1339 = vmul.f32 %v1034, %v1277
  %v1340 = vmul.f32 %v1035, %v1281
  %v1341 = vmul.f32 %v1036, %v1285
  %v1342 = vmul.f32 %v1037, %v1289
  %v1343 = vmul.f32 %v1038, %v1293
  %v1344 = vmul.f32 %v1039, %v1297
  %v1345 = vmul.f32 %v1040, %v1301
  %v1346 = vmul.f32 %v1041, %v1305
  %v1347 = vmul.f32 %v1042, %v1309
  %v1348 = vmul.f32 %v1043, %v1313
  %v1349 = vmul.f32 %v1044, %v1317
  %v1350 = vmul.f32 %v1045, %v1321
  %v1351 = vmul.f32 %v1046, %v1325
  %v1352 = vmul.f32 %v1047, %v1329
  %v1353 = vmul.f32 %v1048, %v1333
  %v1354 = vmul.f32 %v1049, %v1337
  %1355 = vset.pattern.permute.xlu0 1
  %1356 = vperm.xlu0 %1355, %v1017
  %v1357 = vpop.permute.xlu0 %1356
  %1359 = vset.pattern.permute.xlu0 1
  %1360 = vperm.xlu0 %1359, %v1018
  %v1361 = vpop.permute.xlu0 %1360
  %1363 = vset.pattern.permute.xlu0 1
  %1364 = vperm.xlu0 %1363, %v1019
  %v1365 = vpop.permute.xlu0 %1364
  %1367 = vset.pattern.permute.xlu0 1
  %1368 = vperm.xlu0 %1367, %v1020
  %v1369 = vpop.permute.xlu0 %1368
  %1371 = vset.pattern.permute.xlu0 1
  %1372 = vperm.xlu0 %1371, %v1021
  %v1373 = vpop.permute.xlu0 %1372
  %1375 = vset.pattern.permute.xlu0 1
  %1376 = vperm.xlu0 %1375, %v1022
  %v1377 = vpop.permute.xlu0 %1376
  %1379 = vset.pattern.permute.xlu0 1
  %1380 = vperm.xlu0 %1379, %v1023
  %v1381 = vpop.permute.xlu0 %1380
  %1383 = vset.pattern.permute.xlu0 1
  %1384 = vperm.xlu0 %1383, %v1024
  %v1385 = vpop.permute.xlu0 %1384
  %1387 = vset.pattern.permute.xlu0 1
  %1388 = vperm.xlu0 %1387, %v1025
  %v1389 = vpop.permute.xlu0 %1388
  %1391 = vset.pattern.permute.xlu0 1
  %1392 = vperm.xlu0 %1391, %v1026
  %v1393 = vpop.permute.xlu0 %1392
  %1395 = vset.pattern.permute.xlu0 1
  %1396 = vperm.xlu0 %1395, %v1027
  %v1397 = vpop.permute.xlu0 %1396
  %1399 = vset.pattern.permute.xlu0 1
  %1400 = vperm.xlu0 %1399, %v1028
  %v1401 = vpop.permute.xlu0 %1400
  %1403 = vset.pattern.permute.xlu0 1
  %1404 = vperm.xlu0 %1403, %v1029
  %v1405 = vpop.permute.xlu0 %1404
  %1407 = vset.pattern.permute.xlu0 1
  %1408 = vperm.xlu0 %1407, %v1030
  %v1409 = vpop.permute.xlu0 %1408
  %1411 = vset.pattern.permute.xlu0 1
  %1412 = vperm.xlu0 %1411, %v1031
  %v1413 = vpop.permute.xlu0 %1412
  %1415 = vset.pattern.permute.xlu0 1
  %1416 = vperm.xlu0 %1415, %v1032
  %v1417 = vpop.permute.xlu0 %1416
  %v1419 = vadd.f32 %v1339, %v1357
  %v1420 = vadd.f32 %v1340, %v1361
  %v1421 = vadd.f32 %v1341, %v1365
  %v1422 = vadd.f32 %v1342, %v1369
  %v1423 = vadd.f32 %v1343, %v1373
  %v1424 = vadd.f32 %v1344, %v1377
  %v1425 = vadd.f32 %v1345, %v1381
  %v1426 = vadd.f32 %v1346, %v1385
  %v1427 = vadd.f32 %v1347, %v1389
  %v1428 = vadd.f32 %v1348, %v1393
  %v1429 = vadd.f32 %v1349, %v1397
  %v1430 = vadd.f32 %v1350, %v1401
  %v1431 = vadd.f32 %v1351, %v1405
  %v1432 = vadd.f32 %v1352, %v1409
  %v1433 = vadd.f32 %v1353, %v1413
  %v1434 = vadd.f32 %v1354, %v1417
  %v1435 = vmul.f32 %v1067, 1.442695
  %v1436 = vpow.pop %v1435
  %v1437 = vmul.f32 %v1068, 1.442695
  %v1438 = vpow.pop %v1437
  %v1439 = vmul.f32 %v1069, 1.442695
  %v1440 = vpow.pop %v1439
  %v1441 = vmul.f32 %v1070, 1.442695
  %v1442 = vpow.pop %v1441
  %v1443 = vmul.f32 %v1071, 1.442695
  %v1444 = vpow.pop %v1443
  %v1445 = vmul.f32 %v1072, 1.442695
  %v1446 = vpow.pop %v1445
  %v1447 = vmul.f32 %v1073, 1.442695
  %v1448 = vpow.pop %v1447
  %v1449 = vmul.f32 %v1074, 1.442695
  %v1450 = vpow.pop %v1449
  %v1451 = vmul.f32 %v1075, 1.442695
  %v1452 = vpow.pop %v1451
  %v1453 = vmul.f32 %v1076, 1.442695
  %v1454 = vpow.pop %v1453
  %v1455 = vmul.f32 %v1077, 1.442695
  %v1456 = vpow.pop %v1455
  %v1457 = vmul.f32 %v1078, 1.442695
  %v1458 = vpow.pop %v1457
  %v1459 = vmul.f32 %v1079, 1.442695
  %v1460 = vpow.pop %v1459
  %v1461 = vmul.f32 %v1080, 1.442695
  %v1462 = vpow.pop %v1461
  %v1463 = vmul.f32 %v1081, 1.442695
  %v1464 = vpow.pop %v1463
  %v1465 = vmul.f32 %v1082, 1.442695
  %v1466 = vpow.pop %v1465
  %v1467 = vmul.f32 %v1436, %v1086
  %v1468 = vmul.f32 %v1438, %v1091
  %v1469 = vmul.f32 %v1440, %v1096
  %v1470 = vmul.f32 %v1442, %v1101
  %v1471 = vmul.f32 %v1444, %v1106
  %v1472 = vmul.f32 %v1446, %v1111
  %v1473 = vmul.f32 %v1448, %v1116
  %v1474 = vmul.f32 %v1450, %v1121
  %v1475 = vmul.f32 %v1452, %v1126
  %v1476 = vmul.f32 %v1454, %v1131
  %v1477 = vmul.f32 %v1456, %v1136
  %v1478 = vmul.f32 %v1458, %v1141
  %v1479 = vmul.f32 %v1460, %v1146
  %v1480 = vmul.f32 %v1462, %v1151
  %v1481 = vmul.f32 %v1464, %v1156
  %v1482 = vmul.f32 %v1466, %v1161
  %v1483 = vmul.f32 %v1436, %v1277
  %v1484 = vmul.f32 %v1438, %v1281
  %v1485 = vmul.f32 %v1440, %v1285
  %v1486 = vmul.f32 %v1442, %v1289
  %v1487 = vmul.f32 %v1444, %v1293
  %v1488 = vmul.f32 %v1446, %v1297
  %v1489 = vmul.f32 %v1448, %v1301
  %v1490 = vmul.f32 %v1450, %v1305
  %v1491 = vmul.f32 %v1452, %v1309
  %v1492 = vmul.f32 %v1454, %v1313
  %v1493 = vmul.f32 %v1456, %v1317
  %v1494 = vmul.f32 %v1458, %v1321
  %v1495 = vmul.f32 %v1460, %v1325
  %v1496 = vmul.f32 %v1462, %v1329
  %v1497 = vmul.f32 %v1464, %v1333
  %v1498 = vmul.f32 %v1466, %v1337
  %v1499 = vmul.f32 %v1467, 0.5
  %v1500 = vmul.f32 %v1468, 0.5
  %v1501 = vmul.f32 %v1469, 0.5
  %v1502 = vmul.f32 %v1470, 0.5
  %v1503 = vmul.f32 %v1471, 0.5
  %v1504 = vmul.f32 %v1472, 0.5
  %v1505 = vmul.f32 %v1473, 0.5
  %v1506 = vmul.f32 %v1474, 0.5
  %v1507 = vmul.f32 %v1475, 0.5
  %v1508 = vmul.f32 %v1476, 0.5
  %v1509 = vmul.f32 %v1477, 0.5
  %v1510 = vmul.f32 %v1478, 0.5
  %v1511 = vmul.f32 %v1479, 0.5
  %v1512 = vmul.f32 %v1480, 0.5
  %v1513 = vmul.f32 %v1481, 0.5
  %v1514 = vmul.f32 %v1482, 0.5
  %1531 = vrot.lane.b32.xlu0 %v1499, 112
  %v1532 = vpop.permute.xlu0 %1531
  %1533 = vrot.lane.b32.xlu0 %v1500, 112
  %v1534 = vpop.permute.xlu0 %1533
  %1535 = vrot.lane.b32.xlu0 %v1501, 112
  %v1536 = vpop.permute.xlu0 %1535
  %1537 = vrot.lane.b32.xlu0 %v1502, 112
  %v1538 = vpop.permute.xlu0 %1537
  %1539 = vrot.lane.b32.xlu0 %v1503, 112
  %v1540 = vpop.permute.xlu0 %1539
  %1541 = vrot.lane.b32.xlu0 %v1504, 112
  %v1542 = vpop.permute.xlu0 %1541
  %1543 = vrot.lane.b32.xlu0 %v1505, 112
  %v1544 = vpop.permute.xlu0 %1543
  %1545 = vrot.lane.b32.xlu0 %v1506, 112
  %v1546 = vpop.permute.xlu0 %1545
  %1547 = vrot.lane.b32.xlu0 %v1507, 112
  %v1548 = vpop.permute.xlu0 %1547
  %1549 = vrot.lane.b32.xlu0 %v1508, 112
  %v1550 = vpop.permute.xlu0 %1549
  %1551 = vrot.lane.b32.xlu0 %v1509, 112
  %v1552 = vpop.permute.xlu0 %1551
  %1553 = vrot.lane.b32.xlu0 %v1510, 112
  %v1554 = vpop.permute.xlu0 %1553
  %1555 = vrot.lane.b32.xlu0 %v1511, 112
  %v1556 = vpop.permute.xlu0 %1555
  %1557 = vrot.lane.b32.xlu0 %v1512, 112
  %v1558 = vpop.permute.xlu0 %1557
  %1559 = vrot.lane.b32.xlu0 %v1513, 112
  %v1560 = vpop.permute.xlu0 %1559
  %1561 = vrot.lane.b32.xlu0 %v1514, 112
  %v1562 = vpop.permute.xlu0 %1561
  %v1579 = vsub.f32 %v1259, %v1532
  %v1580 = vsub.f32 %v1260, %v1534
  %v1581 = vsub.f32 %v1261, %v1536
  %v1582 = vsub.f32 %v1262, %v1538
  %v1583 = vsub.f32 %v1263, %v1540
  %v1584 = vsub.f32 %v1264, %v1542
  %v1585 = vsub.f32 %v1265, %v1544
  %v1586 = vsub.f32 %v1266, %v1546
  %v1587 = vsub.f32 %v1267, %v1548
  %v1588 = vsub.f32 %v1268, %v1550
  %v1589 = vsub.f32 %v1269, %v1552
  %v1590 = vsub.f32 %v1270, %v1554
  %v1591 = vsub.f32 %v1271, %v1556
  %v1592 = vsub.f32 %v1272, %v1558
  %v1593 = vsub.f32 %v1273, %v1560
  %v1594 = vsub.f32 %v1274, %v1562
  %v1595 = vmax.f32 %v1579, 0.0
  %v1596 = vmax.f32 %v1580, 0.0
  %v1597 = vmax.f32 %v1581, 0.0
  %v1598 = vmax.f32 %v1582, 0.0
  %v1599 = vmax.f32 %v1583, 0.0
  %v1600 = vmax.f32 %v1584, 0.0
  %v1601 = vmax.f32 %v1585, 0.0
  %v1602 = vmax.f32 %v1586, 0.0
  %v1603 = vmax.f32 %v1587, 0.0
  %v1604 = vmax.f32 %v1588, 0.0
  %v1605 = vmax.f32 %v1589, 0.0
  %v1606 = vmax.f32 %v1590, 0.0
  %v1607 = vmax.f32 %v1591, 0.0
  %v1608 = vmax.f32 %v1592, 0.0
  %v1609 = vmax.f32 %v1593, 0.0
  %v1610 = vmax.f32 %v1594, 0.0
  %v1611 = vmin.f32 %v1595, 64.0
  %v1612 = vmin.f32 %v1596, 64.0
  %v1613 = vmin.f32 %v1597, 64.0
  %v1614 = vmin.f32 %v1598, 64.0
  %v1615 = vmin.f32 %v1599, 64.0
  %v1616 = vmin.f32 %v1600, 64.0
  %v1617 = vmin.f32 %v1601, 64.0
  %v1618 = vmin.f32 %v1602, 64.0
  %v1619 = vmin.f32 %v1603, 64.0
  %v1620 = vmin.f32 %v1604, 64.0
  %v1621 = vmin.f32 %v1605, 64.0
  %v1622 = vmin.f32 %v1606, 64.0
  %v1623 = vmin.f32 %v1607, 64.0
  %v1624 = vmin.f32 %v1608, 64.0
  %v1625 = vmin.f32 %v1609, 64.0
  %v1626 = vmin.f32 %v1610, 64.0
  %v1627 = vmul.f32 %v1483, 0.5
  %v1628 = vmul.f32 %v1484, 0.5
  %v1629 = vmul.f32 %v1485, 0.5
  %v1630 = vmul.f32 %v1486, 0.5
  %v1631 = vmul.f32 %v1487, 0.5
  %v1632 = vmul.f32 %v1488, 0.5
  %v1633 = vmul.f32 %v1489, 0.5
  %v1634 = vmul.f32 %v1490, 0.5
  %v1635 = vmul.f32 %v1491, 0.5
  %v1636 = vmul.f32 %v1492, 0.5
  %v1637 = vmul.f32 %v1493, 0.5
  %v1638 = vmul.f32 %v1494, 0.5
  %v1639 = vmul.f32 %v1495, 0.5
  %v1640 = vmul.f32 %v1496, 0.5
  %v1641 = vmul.f32 %v1497, 0.5
  %v1642 = vmul.f32 %v1498, 0.5
  %1659 = vrot.lane.b32.xlu0 %v1627, 112
  %v1660 = vpop.permute.xlu0 %1659
  %1661 = vrot.lane.b32.xlu0 %v1628, 112
  %v1662 = vpop.permute.xlu0 %1661
  %1663 = vrot.lane.b32.xlu0 %v1629, 112
  %v1664 = vpop.permute.xlu0 %1663
  %1665 = vrot.lane.b32.xlu0 %v1630, 112
  %v1666 = vpop.permute.xlu0 %1665
  %1667 = vrot.lane.b32.xlu0 %v1631, 112
  %v1668 = vpop.permute.xlu0 %1667
  %1669 = vrot.lane.b32.xlu0 %v1632, 112
  %v1670 = vpop.permute.xlu0 %1669
  %1671 = vrot.lane.b32.xlu0 %v1633, 112
  %v1672 = vpop.permute.xlu0 %1671
  %1673 = vrot.lane.b32.xlu0 %v1634, 112
  %v1674 = vpop.permute.xlu0 %1673
  %1675 = vrot.lane.b32.xlu0 %v1635, 112
  %v1676 = vpop.permute.xlu0 %1675
  %1677 = vrot.lane.b32.xlu0 %v1636, 112
  %v1678 = vpop.permute.xlu0 %1677
  %1679 = vrot.lane.b32.xlu0 %v1637, 112
  %v1680 = vpop.permute.xlu0 %1679
  %1681 = vrot.lane.b32.xlu0 %v1638, 112
  %v1682 = vpop.permute.xlu0 %1681
  %1683 = vrot.lane.b32.xlu0 %v1639, 112
  %v1684 = vpop.permute.xlu0 %1683
  %1685 = vrot.lane.b32.xlu0 %v1640, 112
  %v1686 = vpop.permute.xlu0 %1685
  %1687 = vrot.lane.b32.xlu0 %v1641, 112
  %v1688 = vpop.permute.xlu0 %1687
  %1689 = vrot.lane.b32.xlu0 %v1642, 112
  %v1690 = vpop.permute.xlu0 %1689
  %v1707 = vsub.f32 %v1419, %v1660
  %v1708 = vsub.f32 %v1420, %v1662
  %v1709 = vsub.f32 %v1421, %v1664
  %v1710 = vsub.f32 %v1422, %v1666
  %v1711 = vsub.f32 %v1423, %v1668
  %v1712 = vsub.f32 %v1424, %v1670
  %v1713 = vsub.f32 %v1425, %v1672
  %v1714 = vsub.f32 %v1426, %v1674
  %v1715 = vsub.f32 %v1427, %v1676
  %v1716 = vsub.f32 %v1428, %v1678
  %v1717 = vsub.f32 %v1429, %v1680
  %v1718 = vsub.f32 %v1430, %v1682
  %v1719 = vsub.f32 %v1431, %v1684
  %v1720 = vsub.f32 %v1432, %v1686
  %v1721 = vsub.f32 %v1433, %v1688
  %v1722 = vsub.f32 %v1434, %v1690
  %v1723 = vmax.f32 %v1707, 0.0
  %v1724 = vmax.f32 %v1708, 0.0
  %v1725 = vmax.f32 %v1709, 0.0
  %v1726 = vmax.f32 %v1710, 0.0
  %v1727 = vmax.f32 %v1711, 0.0
  %v1728 = vmax.f32 %v1712, 0.0
  %v1729 = vmax.f32 %v1713, 0.0
  %v1730 = vmax.f32 %v1714, 0.0
  %v1731 = vmax.f32 %v1715, 0.0
  %v1732 = vmax.f32 %v1716, 0.0
  %v1733 = vmax.f32 %v1717, 0.0
  %v1734 = vmax.f32 %v1718, 0.0
  %v1735 = vmax.f32 %v1719, 0.0
  %v1736 = vmax.f32 %v1720, 0.0
  %v1737 = vmax.f32 %v1721, 0.0
  %v1738 = vmax.f32 %v1722, 0.0
  %v1739 = vmin.f32 %v1723, 64.0
  %v1740 = vmin.f32 %v1724, 64.0
  %v1741 = vmin.f32 %v1725, 64.0
  %v1742 = vmin.f32 %v1726, 64.0
  %v1743 = vmin.f32 %v1727, 64.0
  %v1744 = vmin.f32 %v1728, 64.0
  %v1745 = vmin.f32 %v1729, 64.0
  %v1746 = vmin.f32 %v1730, 64.0
  %v1747 = vmin.f32 %v1731, 64.0
  %v1748 = vmin.f32 %v1732, 64.0
  %v1749 = vmin.f32 %v1733, 64.0
  %v1750 = vmin.f32 %v1734, 64.0
  %v1751 = vmin.f32 %v1735, 64.0
  %v1752 = vmin.f32 %v1736, 64.0
  %v1753 = vmin.f32 %v1737, 64.0
  %v1754 = vmin.f32 %v1738, 64.0
  %v1755 = vadd.f32 %v1259, %v1532
  %v1756 = vadd.f32 %v1260, %v1534
  %v1757 = vadd.f32 %v1261, %v1536
  %v1758 = vadd.f32 %v1262, %v1538
  %v1759 = vadd.f32 %v1263, %v1540
  %v1760 = vadd.f32 %v1264, %v1542
  %v1761 = vadd.f32 %v1265, %v1544
  %v1762 = vadd.f32 %v1266, %v1546
  %v1763 = vadd.f32 %v1267, %v1548
  %v1764 = vadd.f32 %v1268, %v1550
  %v1765 = vadd.f32 %v1269, %v1552
  %v1766 = vadd.f32 %v1270, %v1554
  %v1767 = vadd.f32 %v1271, %v1556
  %v1768 = vadd.f32 %v1272, %v1558
  %v1769 = vadd.f32 %v1273, %v1560
  %v1770 = vadd.f32 %v1274, %v1562
  %v1771 = vmax.f32 %v1755, 0.0
  %v1772 = vmax.f32 %v1756, 0.0
  %v1773 = vmax.f32 %v1757, 0.0
  %v1774 = vmax.f32 %v1758, 0.0
  %v1775 = vmax.f32 %v1759, 0.0
  %v1776 = vmax.f32 %v1760, 0.0
  %v1777 = vmax.f32 %v1761, 0.0
  %v1778 = vmax.f32 %v1762, 0.0
  %v1779 = vmax.f32 %v1763, 0.0
  %v1780 = vmax.f32 %v1764, 0.0
  %v1781 = vmax.f32 %v1765, 0.0
  %v1782 = vmax.f32 %v1766, 0.0
  %v1783 = vmax.f32 %v1767, 0.0
  %v1784 = vmax.f32 %v1768, 0.0
  %v1785 = vmax.f32 %v1769, 0.0
  %v1786 = vmax.f32 %v1770, 0.0
  %v1787 = vmin.f32 %v1771, 64.0
  %v1788 = vmin.f32 %v1772, 64.0
  %v1789 = vmin.f32 %v1773, 64.0
  %v1790 = vmin.f32 %v1774, 64.0
  %v1791 = vmin.f32 %v1775, 64.0
  %v1792 = vmin.f32 %v1776, 64.0
  %v1793 = vmin.f32 %v1777, 64.0
  %v1794 = vmin.f32 %v1778, 64.0
  %v1795 = vmin.f32 %v1779, 64.0
  %v1796 = vmin.f32 %v1780, 64.0
  %v1797 = vmin.f32 %v1781, 64.0
  %v1798 = vmin.f32 %v1782, 64.0
  %v1799 = vmin.f32 %v1783, 64.0
  %v1800 = vmin.f32 %v1784, 64.0
  %v1801 = vmin.f32 %v1785, 64.0
  %v1802 = vmin.f32 %v1786, 64.0
  %v1803 = vadd.f32 %v1419, %v1660
  %v1804 = vadd.f32 %v1420, %v1662
  %v1805 = vadd.f32 %v1421, %v1664
  %v1806 = vadd.f32 %v1422, %v1666
  %v1807 = vadd.f32 %v1423, %v1668
  %v1808 = vadd.f32 %v1424, %v1670
  %v1809 = vadd.f32 %v1425, %v1672
  %v1810 = vadd.f32 %v1426, %v1674
  %v1811 = vadd.f32 %v1427, %v1676
  %v1812 = vadd.f32 %v1428, %v1678
  %v1813 = vadd.f32 %v1429, %v1680
  %v1814 = vadd.f32 %v1430, %v1682
  %v1815 = vadd.f32 %v1431, %v1684
  %v1816 = vadd.f32 %v1432, %v1686
  %v1817 = vadd.f32 %v1433, %v1688
  %v1818 = vadd.f32 %v1434, %v1690
  %v1819 = vmax.f32 %v1803, 0.0
  %v1820 = vmax.f32 %v1804, 0.0
  %v1821 = vmax.f32 %v1805, 0.0
  %v1822 = vmax.f32 %v1806, 0.0
  %v1823 = vmax.f32 %v1807, 0.0
  %v1824 = vmax.f32 %v1808, 0.0
  %v1825 = vmax.f32 %v1809, 0.0
  %v1826 = vmax.f32 %v1810, 0.0
  %v1827 = vmax.f32 %v1811, 0.0
  %v1828 = vmax.f32 %v1812, 0.0
  %v1829 = vmax.f32 %v1813, 0.0
  %v1830 = vmax.f32 %v1814, 0.0
  %v1831 = vmax.f32 %v1815, 0.0
  %v1832 = vmax.f32 %v1816, 0.0
  %v1833 = vmax.f32 %v1817, 0.0
  %v1834 = vmax.f32 %v1818, 0.0
  %v1835 = vmin.f32 %v1819, 64.0
  %v1836 = vmin.f32 %v1820, 64.0
  %v1837 = vmin.f32 %v1821, 64.0
  %v1838 = vmin.f32 %v1822, 64.0
  %v1839 = vmin.f32 %v1823, 64.0
  %v1840 = vmin.f32 %v1824, 64.0
  %v1841 = vmin.f32 %v1825, 64.0
  %v1842 = vmin.f32 %v1826, 64.0
  %v1843 = vmin.f32 %v1827, 64.0
  %v1844 = vmin.f32 %v1828, 64.0
  %v1845 = vmin.f32 %v1829, 64.0
  %v1846 = vmin.f32 %v1830, 64.0
  %v1847 = vmin.f32 %v1831, 64.0
  %v1848 = vmin.f32 %v1832, 64.0
  %v1849 = vmin.f32 %v1833, 64.0
  %v1850 = vmin.f32 %v1834, 64.0
  %1867 = vrot.lane.b32.xlu0 %v1787, 16
  %v1868 = vpop.permute.xlu0 %1867
  %1869 = vrot.lane.b32.xlu0 %v1788, 16
  %v1870 = vpop.permute.xlu0 %1869
  %1871 = vrot.lane.b32.xlu0 %v1789, 16
  %v1872 = vpop.permute.xlu0 %1871
  %1873 = vrot.lane.b32.xlu0 %v1790, 16
  %v1874 = vpop.permute.xlu0 %1873
  %1875 = vrot.lane.b32.xlu0 %v1791, 16
  %v1876 = vpop.permute.xlu0 %1875
  %1877 = vrot.lane.b32.xlu0 %v1792, 16
  %v1878 = vpop.permute.xlu0 %1877
  %1879 = vrot.lane.b32.xlu0 %v1793, 16
  %v1880 = vpop.permute.xlu0 %1879
  %1881 = vrot.lane.b32.xlu0 %v1794, 16
  %v1882 = vpop.permute.xlu0 %1881
  %1883 = vrot.lane.b32.xlu0 %v1795, 16
  %v1884 = vpop.permute.xlu0 %1883
  %1885 = vrot.lane.b32.xlu0 %v1796, 16
  %v1886 = vpop.permute.xlu0 %1885
  %1887 = vrot.lane.b32.xlu0 %v1797, 16
  %v1888 = vpop.permute.xlu0 %1887
  %1889 = vrot.lane.b32.xlu0 %v1798, 16
  %v1890 = vpop.permute.xlu0 %1889
  %1891 = vrot.lane.b32.xlu0 %v1799, 16
  %v1892 = vpop.permute.xlu0 %1891
  %1893 = vrot.lane.b32.xlu0 %v1800, 16
  %v1894 = vpop.permute.xlu0 %1893
  %1895 = vrot.lane.b32.xlu0 %v1801, 16
  %v1896 = vpop.permute.xlu0 %1895
  %1897 = vrot.lane.b32.xlu0 %v1802, 16
  %v1898 = vpop.permute.xlu0 %1897
  %1931 = vrot.lane.b32.xlu0 %v1835, 16
  %v1932 = vpop.permute.xlu0 %1931
  %1933 = vrot.lane.b32.xlu0 %v1836, 16
  %v1934 = vpop.permute.xlu0 %1933
  %1935 = vrot.lane.b32.xlu0 %v1837, 16
  %v1936 = vpop.permute.xlu0 %1935
  %1937 = vrot.lane.b32.xlu0 %v1838, 16
  %v1938 = vpop.permute.xlu0 %1937
  %1939 = vrot.lane.b32.xlu0 %v1839, 16
  %v1940 = vpop.permute.xlu0 %1939
  %1941 = vrot.lane.b32.xlu0 %v1840, 16
  %v1942 = vpop.permute.xlu0 %1941
  %1943 = vrot.lane.b32.xlu0 %v1841, 16
  %v1944 = vpop.permute.xlu0 %1943
  %1945 = vrot.lane.b32.xlu0 %v1842, 16
  %v1946 = vpop.permute.xlu0 %1945
  %1947 = vrot.lane.b32.xlu0 %v1843, 16
  %v1948 = vpop.permute.xlu0 %1947
  %1949 = vrot.lane.b32.xlu0 %v1844, 16
  %v1950 = vpop.permute.xlu0 %1949
  %1951 = vrot.lane.b32.xlu0 %v1845, 16
  %v1952 = vpop.permute.xlu0 %1951
  %1953 = vrot.lane.b32.xlu0 %v1846, 16
  %v1954 = vpop.permute.xlu0 %1953
  %1955 = vrot.lane.b32.xlu0 %v1847, 16
  %v1956 = vpop.permute.xlu0 %1955
  %1957 = vrot.lane.b32.xlu0 %v1848, 16
  %v1958 = vpop.permute.xlu0 %1957
  %1959 = vrot.lane.b32.xlu0 %v1849, 16
  %v1960 = vpop.permute.xlu0 %1959
  %1961 = vrot.lane.b32.xlu0 %v1850, 16
  %v1962 = vpop.permute.xlu0 %1961
  %v1979 = vsel %vm664, %v825, 0.0
  %v1980 = vsel %vm664, %v826, 0.0
  %v1981 = vsel %vm664, %v827, 0.0
  %v1982 = vsel %vm664, %v828, 0.0
  %v1983 = vsel %vm664, %v829, 0.0
  %v1984 = vsel %vm664, %v830, 0.0
  %v1985 = vsel %vm664, %v831, 0.0
  %v1986 = vsel %vm664, %v832, 0.0
  %v1987 = vsel %vm664, %v833, 0.0
  %v1988 = vsel %vm664, %v834, 0.0
  %v1989 = vsel %vm664, %v835, 0.0
  %v1990 = vsel %vm664, %v836, 0.0
  %v1991 = vsel %vm664, %v837, 0.0
  %v1992 = vsel %vm664, %v838, 0.0
  %v1993 = vsel %vm664, %v839, 0.0
  %v1994 = vsel %vm664, %v840, 0.0
  %vm1995 = vcmask 130048
  %v1996 = vsel %vm1995, %v1979, %v1611
  %v1997 = vsel %vm1995, %v1980, %v1612
  %v1998 = vsel %vm1995, %v1981, %v1613
  %v1999 = vsel %vm1995, %v1982, %v1614
  %v2000 = vsel %vm1995, %v1983, %v1615
  %v2001 = vsel %vm1995, %v1984, %v1616
  %v2002 = vsel %vm1995, %v1985, %v1617
  %v2003 = vsel %vm1995, %v1986, %v1618
  %v2004 = vsel %vm1995, %v1987, %v1619
  %v2005 = vsel %vm1995, %v1988, %v1620
  %v2006 = vsel %vm1995, %v1989, %v1621
  %v2007 = vsel %vm1995, %v1990, %v1622
  %v2008 = vsel %vm1995, %v1991, %v1623
  %v2009 = vsel %vm1995, %v1992, %v1624
  %v2010 = vsel %vm1995, %v1993, %v1625
  %v2011 = vsel %vm1995, %v1994, %v1626
  %vm2012 = vcmask 195584
  %v2013 = vsel %vm2012, %v1996, %v1739
  %v2014 = vsel %vm2012, %v1997, %v1740
  %v2015 = vsel %vm2012, %v1998, %v1741
  %v2016 = vsel %vm2012, %v1999, %v1742
  %v2017 = vsel %vm2012, %v2000, %v1743
  %v2018 = vsel %vm2012, %v2001, %v1744
  %v2019 = vsel %vm2012, %v2002, %v1745
  %v2020 = vsel %vm2012, %v2003, %v1746
  %v2021 = vsel %vm2012, %v2004, %v1747
  %v2022 = vsel %vm2012, %v2005, %v1748
  %v2023 = vsel %vm2012, %v2006, %v1749
  %v2024 = vsel %vm2012, %v2007, %v1750
  %v2025 = vsel %vm2012, %v2008, %v1751
  %v2026 = vsel %vm2012, %v2009, %v1752
  %v2027 = vsel %vm2012, %v2010, %v1753
  %v2028 = vsel %vm2012, %v2011, %v1754
  %vm2029 = vcmask 261120
  %v2030 = vsel %vm2029, %v2013, %v1868
  %v2031 = vsel %vm2029, %v2014, %v1870
  %v2032 = vsel %vm2029, %v2015, %v1872
  %v2033 = vsel %vm2029, %v2016, %v1874
  %v2034 = vsel %vm2029, %v2017, %v1876
  %v2035 = vsel %vm2029, %v2018, %v1878
  %v2036 = vsel %vm2029, %v2019, %v1880
  %v2037 = vsel %vm2029, %v2020, %v1882
  %v2038 = vsel %vm2029, %v2021, %v1884
  %v2039 = vsel %vm2029, %v2022, %v1886
  %v2040 = vsel %vm2029, %v2023, %v1888
  %v2041 = vsel %vm2029, %v2024, %v1890
  %v2042 = vsel %vm2029, %v2025, %v1892
  %v2043 = vsel %vm2029, %v2026, %v1894
  %v2044 = vsel %vm2029, %v2027, %v1896
  %v2045 = vsel %vm2029, %v2028, %v1898
  %vm2046 = vcmask 326656
  %v2047 = vsel %vm2046, %v2030, %v1932
  %v2048 = vsel %vm2046, %v2031, %v1934
  %v2049 = vsel %vm2046, %v2032, %v1936
  %v2050 = vsel %vm2046, %v2033, %v1938
  %v2051 = vsel %vm2046, %v2034, %v1940
  %v2052 = vsel %vm2046, %v2035, %v1942
  %v2053 = vsel %vm2046, %v2036, %v1944
  %v2054 = vsel %vm2046, %v2037, %v1946
  %v2055 = vsel %vm2046, %v2038, %v1948
  %v2056 = vsel %vm2046, %v2039, %v1950
  %v2057 = vsel %vm2046, %v2040, %v1952
  %v2058 = vsel %vm2046, %v2041, %v1954
  %v2059 = vsel %vm2046, %v2042, %v1956
  %v2060 = vsel %vm2046, %v2043, %v1958
  %v2061 = vsel %vm2046, %v2044, %v1960
  %v2062 = vsel %vm2046, %v2045, %v1962
  %vm2063 = vcmask 392192
  %v2064 = vsel %vm2063, %v2047, 0.0
  %v2065 = vsel %vm2063, %v2048, 0.0
  %v2066 = vsel %vm2063, %v2049, 0.0
  %v2067 = vsel %vm2063, %v2050, 0.0
  %v2068 = vsel %vm2063, %v2051, 0.0
  %v2069 = vsel %vm2063, %v2052, 0.0
  %v2070 = vsel %vm2063, %v2053, 0.0
  %v2071 = vsel %vm2063, %v2054, 0.0
  %v2072 = vsel %vm2063, %v2055, 0.0
  %v2073 = vsel %vm2063, %v2056, 0.0
  %v2074 = vsel %vm2063, %v2057, 0.0
  %v2075 = vsel %vm2063, %v2058, 0.0
  %v2076 = vsel %vm2063, %v2059, 0.0
  %v2077 = vsel %vm2063, %v2060, 0.0
  %v2078 = vsel %vm2063, %v2061, 0.0
  %v2079 = vsel %vm2063, %v2062, 0.0
  %2080 = vst [vmem:[%s9] sm:$0xff] %v2064
  %2081 = vst [vmem:[%s9 + $0x8] sm:$0xff] %v2065
  %2082 = vst [vmem:[%s9 + $0x10] sm:$0xff] %v2066
  %2083 = vst [vmem:[%s9 + $0x18] sm:$0xff] %v2067
  %2084 = vst [vmem:[%s9 + $0x20] sm:$0xff] %v2068
  %2085 = vst [vmem:[%s9 + $0x28] sm:$0xff] %v2069
  %2086 = vst [vmem:[%s9 + $0x30] sm:$0xff] %v2070
  %2087 = vst [vmem:[%s9 + $0x38] sm:$0xff] %v2071
  %2088 = vst [vmem:[%s9 + $0x40] sm:$0xff] %v2072
  %2089 = vst [vmem:[%s9 + $0x48] sm:$0xff] %v2073
  %2090 = vst [vmem:[%s9 + $0x50] sm:$0xff] %v2074
  %2091 = vst [vmem:[%s9 + $0x58] sm:$0xff] %v2075
  %2092 = vst [vmem:[%s9 + $0x60] sm:$0xff] %v2076
  %2093 = vst [vmem:[%s9 + $0x68] sm:$0xff] %v2077
  %2094 = vst [vmem:[%s9 + $0x70] sm:$0xff] %v2078
  %2095 = vst [vmem:[%s9 + $0x78] sm:$0xff] %v2079
  // Predicated region
  $region34: #{standard_roi_heads_forward.1} parent=0 // pred_check
    _
  $region35: #{standard_roi_heads_forward.1} parent=0 // pred_check_branch
    %2097 = sbr.rel (0) target = $region37
  $region36: #{standard_roi_heads_forward.1} parent=0 // pred_region
    _
  $region37: #{standard_roi_heads_forward.1} parent=0 // pred_fallthru
    _
  // Predicated region
  $region38: #{standard_roi_heads_forward.1} parent=0 // pred_check
    _
  $region39: #{standard_roi_heads_forward.1} parent=0 // pred_check_branch
    %2099 = sbr.rel (0) target = $region41
  $region40: #{standard_roi_heads_forward.1} parent=0 // pred_region
    _
  $region41: #{standard_roi_heads_forward.1} parent=0 // pred_fallthru
    _
  // Predicated region
  $region42: #{standard_roi_heads_forward.1} parent=0 // pred_check
    _
  $region43: #{standard_roi_heads_forward.1} parent=0 // pred_check_branch
    %2101 = sbr.rel (0) target = $region45
  $region44: #{standard_roi_heads_forward.1} parent=0 // pred_region
    _
  $region45: #{standard_roi_heads_forward.1} parent=0 // pred_fallthru
    _
  // Predicated region
  $region46: #{standard_roi_heads_forward.1} parent=0 // pred_check
    _
  $region47: #{standard_roi_heads_forward.1} parent=0 // pred_check_branch
    %2103 = sbr.rel (0) target = $region49
  $region48: #{standard_roi_heads_forward.1} parent=0 // pred_region
    _
  $region49: #{standard_roi_heads_forward.1} parent=0 // pred_fallthru
    _

</llo_original>
